<compile_context>
chip_gen: v7x
topology: tpu7x:2x2x1
jax: 0.10.0
libtpu: 0.0.40
codegen_flags: <defaults>
</compile_context>

<pallas_src>
import jax
import jax.numpy as jnp
from jax.experimental import pallas as pl
from jax.experimental.pallas import tpu as pltpu

N_BATCH = 2
C_IN = 3
C_MID = 6                  # self.channel_size
W_IN = 500                 # implied by fc1: 6 * 1 * (W - 6) == 2964  ->  W = 500
KW = 7                     # kernel_size = (1, 7)
W_OUT1 = W_IN - KW + 1     # 494
CIK = C_IN * KW            # 21
FLAT = C_MID * W_OUT1      # 2964
FC1_DIM, FC2_DIM, FC3_DIM = 16, 64, 1


def cnn2d_shallow_kernel(xcol_ref, wb_ref, b1_ref, wf1_ref, bf1_ref,
                         wf2_ref, bf2_ref, wf3_ref, bf3_ref, out_ref):
    # xcol_ref : (42, 494)      im2col input, rows = n*21 + ci*7 + k, lanes = w
    # wb_ref   : (12, 42)       block-diagonal conv weight, rows = co*2 + n
    # b1_ref   : (12, 1)        conv bias replicated per sample (rows co*2 + n)
    # wf1_ref  : (6, 16, 494)   fc1 weight, lane-dense: wf1[co, j, w] = W[j, co*494+w]
    # bf1_ref  : (1, 16)
    # wf2_ref  : (16, 64), bf2_ref : (1, 64)
    # wf3_ref  : (64, 1),  bf3_ref : (1, 1)
    # out_ref  : (N, 1)

    # ---- conv1 (both samples, all 7 taps, all 3 input channels): ONE matmul
    h = jnp.dot(wb_ref[...], xcol_ref[...],
                preferred_element_type=jnp.float32)          # (12, 494)
    h = jnp.maximum(h + b1_ref[...], 0.0)                    # relu -> torch "x"

    # (conv2 output is dead in the torch forward; skipped.)

    # ---- fc1: contract over W per output channel, both samples at once.
    #      z[n, j] = sum_co sum_w h[co*2+n, w] * wf1[co, j, w]
    #      A@B^T form keeps the fc1 weight lane-dense (contraction on lanes).
    z = jnp.zeros((N_BATCH, FC1_DIM), jnp.float32)
    for co in range(C_MID):                                  # tiny static unroll
        h_co = h[co * N_BATCH:(co + 1) * N_BATCH, :]         # (2, 494) sublane slice
        z = z + jax.lax.dot_general(
            h_co, wf1_ref[co],
            dimension_numbers=(((1,), (1,)), ((), ())),      # contract lanes of both
            preferred_element_type=jnp.float32)              # (2, 16)
    z = jnp.maximum(z + bf1_ref[...], 0.0)                   # (2, 16)

    # ---- fc2 + relu (batched over samples)
    z = jnp.maximum(
        jnp.dot(z, wf2_ref[...], preferred_element_type=jnp.float32)
        + bf2_ref[...], 0.0)                                 # (2, 64)

    # ---- fc3
    out_ref[...] = (jnp.dot(z, wf3_ref[...], preferred_element_type=jnp.float32)
                    + bf3_ref[...])                          # (2, 1)


def make_params(key):
    """Deterministic params with the shapes nn.Module.__init__ implies."""
    ks = jax.random.split(key, 10)

    def uinit(k, shape, fan_in):
        bound = 1.0 / (fan_in ** 0.5)
        return jax.random.uniform(k, shape, jnp.float32, -bound, bound)

    return dict(
        w_conv1=uinit(ks[0], (C_MID, C_IN, 1, KW), C_IN * KW),
        b_conv1=uinit(ks[1], (C_MID,), C_IN * KW),
        w_conv2=uinit(ks[2], (C_MID, C_MID, 1, KW), C_MID * KW),  # unused (dead)
        b_conv2=uinit(ks[3], (C_MID,), C_MID * KW),               # unused (dead)
        w_fc1=uinit(ks[4], (FC1_DIM, FLAT), FLAT),
        b_fc1=uinit(ks[5], (FC1_DIM,), FLAT),
        w_fc2=uinit(ks[6], (FC2_DIM, FC1_DIM), FC1_DIM),
        b_fc2=uinit(ks[7], (FC2_DIM,), FC1_DIM),
        w_fc3=uinit(ks[8], (FC3_DIM, FC2_DIM), FC2_DIM),
        b_fc3=uinit(ks[9], (FC3_DIM,), FC2_DIM),
    )


def cnn2d_shallow_forward(x_nchw, p):
    """Glue: arrange lane-dense layouts (plain JAX) and call the Pallas kernel."""
    x = x_nchw[:, :, 0, :].astype(jnp.float32)                       # (N, 3, 500)

    # im2col: rows r = n*21 + ci*7 + k, lanes = output position w (lane-dense)
    cols = jnp.stack([x[:, :, k:k + W_OUT1] for k in range(KW)], axis=2)  # (N,3,7,494)
    xcol = cols.reshape(N_BATCH, CIK, W_OUT1).reshape(N_BATCH * CIK, W_OUT1)  # (42,494)

    # conv1 weight as interleaved block-diagonal so one matmul covers both samples:
    #   Wb[co*N + n, m*21 + cik] = w1[co, cik] * (n == m)
    w1 = p["w_conv1"][:, :, 0, :].reshape(C_MID, CIK)                # (6, 21)
    eye = jnp.eye(N_BATCH, dtype=jnp.float32)
    wb = jnp.einsum("oc,nm->onmc", w1, eye).reshape(C_MID * N_BATCH,
                                                    N_BATCH * CIK)   # (12, 42)
    b1 = jnp.repeat(p["b_conv1"], N_BATCH).reshape(C_MID * N_BATCH, 1)  # (12, 1)

    # fc1 weight, lane-dense relayout: wf1[co, j, w] = W_fc1[j, co*494 + w]
    wf1 = jnp.transpose(p["w_fc1"].reshape(FC1_DIM, C_MID, W_OUT1),
                        (1, 0, 2))                                   # (6, 16, 494)
    bf1 = p["b_fc1"].reshape(1, FC1_DIM)
    wf2t = p["w_fc2"].T                                              # (16, 64)
    bf2 = p["b_fc2"].reshape(1, FC2_DIM)
    wf3t = p["w_fc3"].T                                              # (64, 1)
    bf3 = p["b_fc3"].reshape(1, FC3_DIM)

    vmem = pl.BlockSpec(memory_space=pltpu.MemorySpace.VMEM)
    # Gridless: total padded VMEM footprint < 1 MiB.  If batch grows, grid over
    # batch (parallel semantics) and keep weights on index_map->0 BlockSpecs.
    return pl.pallas_call(
        cnn2d_shallow_kernel,
        out_shape=jax.ShapeDtypeStruct((N_BATCH, 1), jnp.float32),
        in_specs=[vmem] * 9,
        out_specs=vmem,
    )(xcol, wb, b1, wf1, bf1, wf2t, bf2, wf3t, bf3)


def reference_forward(x_nchw, p):
    """Pure-JAX reference matching the torch forward semantics."""
    h = jax.lax.conv_general_dilated(
        x_nchw, p["w_conv1"], window_strides=(1, 1), padding="VALID",
        dimension_numbers=("NCHW", "OIHW", "NCHW"))
    h = jax.nn.relu(h + p["b_conv1"][None, :, None, None])    # (N, 6, 1, 494)
    flat = h.reshape(h.shape[0], -1)                           # (N, 2964)
    z = jax.nn.relu(flat @ p["w_fc1"].T + p["b_fc1"])
    z = jax.nn.relu(z @ p["w_fc2"].T + p["b_fc2"])
    return z @ p["w_fc3"].T + p["b_fc3"]                       # (N, 1)


if __name__ == "__main__":
    key = jax.random.PRNGKey(0)
    kx, kp = jax.random.split(key)
    x = jax.random.normal(kx, (N_BATCH, C_IN, 1, W_IN), jnp.float32)
    params = make_params(kp)

    out = cnn2d_shallow_forward(x, params)
    out = jax.block_until_ready(out)

    ref = jax.block_until_ready(reference_forward(x, params))
    assert out.shape == (N_BATCH, 1)
    assert jnp.allclose(out, ref, rtol=1e-3, atol=1e-3), (out, ref)

    print("KERNEL_OK")
</pallas_src>

<mosaic_0001>
module attributes {stable_mosaic.version = 11 : i64} {
  func.func @cnn2d_shallow_kernel(%arg0: memref<42x494xf32, #tpu.memory_space<vmem>>, %arg1: memref<12x42xf32, #tpu.memory_space<vmem>>, %arg2: memref<12x1xf32, #tpu.memory_space<vmem>>, %arg3: memref<6x16x494xf32, #tpu.memory_space<vmem>>, %arg4: memref<1x16xf32, #tpu.memory_space<vmem>>, %arg5: memref<16x64xf32, #tpu.memory_space<vmem>>, %arg6: memref<1x64xf32, #tpu.memory_space<vmem>>, %arg7: memref<64x1xf32, #tpu.memory_space<vmem>>, %arg8: memref<1x1xf32, #tpu.memory_space<vmem>>, %arg9: memref<2x1xf32, #tpu.memory_space<vmem>>) attributes {dimension_semantics = [], scalar_prefetch = 0 : i64, scratch_operands = 0 : i64, tpu.core_type = #tpu.core_type<tc>} {
    %c0 = arith.constant 0 : index
    %c0_0 = arith.constant 0 : index
    %0 = vector.load %arg1[%c0, %c0_0] : memref<12x42xf32, #tpu.memory_space<vmem>>, vector<12x42xf32>
    %c0_1 = arith.constant 0 : index
    %c0_2 = arith.constant 0 : index
    %1 = vector.load %arg0[%c0_1, %c0_2] : memref<42x494xf32, #tpu.memory_space<vmem>>, vector<42x494xf32>
    %cst = arith.constant dense<0.000000e+00> : vector<12x494xf32>
    %2 = tpu.matmul %0, %1, %cst {dimension_numbers = #tpu.dot_dimension_numbers<[1], [0], [0], [1], [0, 0, 1, 1], [], []>} : vector<12x42xf32>, vector<42x494xf32>, vector<12x494xf32> -> vector<12x494xf32>
    %c0_3 = arith.constant 0 : index
    %c0_4 = arith.constant 0 : index
    %3 = vector.load %arg2[%c0_3, %c0_4] : memref<12x1xf32, #tpu.memory_space<vmem>>, vector<12x1xf32>
    %4 = vector.broadcast %3 : vector<12x1xf32> to vector<12x494xf32>
    %5 = arith.addf %2, %4 : vector<12x494xf32>
    %cst_5 = arith.constant 0.000000e+00 : f32
    %6 = vector.broadcast %cst_5 : f32 to vector<12x494xf32>
    %7 = arith.maximumf %5, %6 : vector<12x494xf32>
    %cst_6 = arith.constant 0.000000e+00 : f32
    %8 = vector.broadcast %cst_6 : f32 to vector<2x16xf32>
    %9 = vector.extract_strided_slice %7 {offsets = [0, 0], sizes = [2, 494], strides = [1, 1]} : vector<12x494xf32> to vector<2x494xf32>
    %c0_7 = arith.constant 0 : index
    %c0_8 = arith.constant 0 : index
    %c0_9 = arith.constant 0 : index
    %10 = vector.load %arg3[%c0_7, %c0_8, %c0_9] : memref<6x16x494xf32, #tpu.memory_space<vmem>>, vector<1x16x494xf32>
    %11 = vector.shape_cast %10 : vector<1x16x494xf32> to vector<16x494xf32>
    %cst_10 = arith.constant dense<0.000000e+00> : vector<2x16xf32>
    %12 = tpu.matmul %9, %11, %cst_10 {dimension_numbers = #tpu.dot_dimension_numbers<[1], [1], [0], [0], [0, 0, 1, 0], [], []>} : vector<2x494xf32>, vector<16x494xf32>, vector<2x16xf32> -> vector<2x16xf32>
    %13 = arith.addf %8, %12 : vector<2x16xf32>
    %14 = vector.extract_strided_slice %7 {offsets = [2, 0], sizes = [2, 494], strides = [1, 1]} : vector<12x494xf32> to vector<2x494xf32>
    %c1 = arith.constant 1 : index
    %c0_11 = arith.constant 0 : index
    %c0_12 = arith.constant 0 : index
    %15 = vector.load %arg3[%c1, %c0_11, %c0_12] : memref<6x16x494xf32, #tpu.memory_space<vmem>>, vector<1x16x494xf32>
    %16 = vector.shape_cast %15 : vector<1x16x494xf32> to vector<16x494xf32>
    %cst_13 = arith.constant dense<0.000000e+00> : vector<2x16xf32>
    %17 = tpu.matmul %14, %16, %cst_13 {dimension_numbers = #tpu.dot_dimension_numbers<[1], [1], [0], [0], [0, 0, 1, 0], [], []>} : vector<2x494xf32>, vector<16x494xf32>, vector<2x16xf32> -> vector<2x16xf32>
    %18 = arith.addf %13, %17 : vector<2x16xf32>
    %19 = vector.extract_strided_slice %7 {offsets = [4, 0], sizes = [2, 494], strides = [1, 1]} : vector<12x494xf32> to vector<2x494xf32>
    %c2 = arith.constant 2 : index
    %c0_14 = arith.constant 0 : index
    %c0_15 = arith.constant 0 : index
    %20 = vector.load %arg3[%c2, %c0_14, %c0_15] : memref<6x16x494xf32, #tpu.memory_space<vmem>>, vector<1x16x494xf32>
    %21 = vector.shape_cast %20 : vector<1x16x494xf32> to vector<16x494xf32>
    %cst_16 = arith.constant dense<0.000000e+00> : vector<2x16xf32>
    %22 = tpu.matmul %19, %21, %cst_16 {dimension_numbers = #tpu.dot_dimension_numbers<[1], [1], [0], [0], [0, 0, 1, 0], [], []>} : vector<2x494xf32>, vector<16x494xf32>, vector<2x16xf32> -> vector<2x16xf32>
    %23 = arith.addf %18, %22 : vector<2x16xf32>
    %24 = vector.extract_strided_slice %7 {offsets = [6, 0], sizes = [2, 494], strides = [1, 1]} : vector<12x494xf32> to vector<2x494xf32>
    %c3 = arith.constant 3 : index
    %c0_17 = arith.constant 0 : index
    %c0_18 = arith.constant 0 : index
    %25 = vector.load %arg3[%c3, %c0_17, %c0_18] : memref<6x16x494xf32, #tpu.memory_space<vmem>>, vector<1x16x494xf32>
    %26 = vector.shape_cast %25 : vector<1x16x494xf32> to vector<16x494xf32>
    %cst_19 = arith.constant dense<0.000000e+00> : vector<2x16xf32>
    %27 = tpu.matmul %24, %26, %cst_19 {dimension_numbers = #tpu.dot_dimension_numbers<[1], [1], [0], [0], [0, 0, 1, 0], [], []>} : vector<2x494xf32>, vector<16x494xf32>, vector<2x16xf32> -> vector<2x16xf32>
    %28 = arith.addf %23, %27 : vector<2x16xf32>
    %29 = vector.extract_strided_slice %7 {offsets = [8, 0], sizes = [2, 494], strides = [1, 1]} : vector<12x494xf32> to vector<2x494xf32>
    %c4 = arith.constant 4 : index
    %c0_20 = arith.constant 0 : index
    %c0_21 = arith.constant 0 : index
    %30 = vector.load %arg3[%c4, %c0_20, %c0_21] : memref<6x16x494xf32, #tpu.memory_space<vmem>>, vector<1x16x494xf32>
    %31 = vector.shape_cast %30 : vector<1x16x494xf32> to vector<16x494xf32>
    %cst_22 = arith.constant dense<0.000000e+00> : vector<2x16xf32>
    %32 = tpu.matmul %29, %31, %cst_22 {dimension_numbers = #tpu.dot_dimension_numbers<[1], [1], [0], [0], [0, 0, 1, 0], [], []>} : vector<2x494xf32>, vector<16x494xf32>, vector<2x16xf32> -> vector<2x16xf32>
    %33 = arith.addf %28, %32 : vector<2x16xf32>
    %34 = vector.extract_strided_slice %7 {offsets = [10, 0], sizes = [2, 494], strides = [1, 1]} : vector<12x494xf32> to vector<2x494xf32>
    %c5 = arith.constant 5 : index
    %c0_23 = arith.constant 0 : index
    %c0_24 = arith.constant 0 : index
    %35 = vector.load %arg3[%c5, %c0_23, %c0_24] : memref<6x16x494xf32, #tpu.memory_space<vmem>>, vector<1x16x494xf32>
    %36 = vector.shape_cast %35 : vector<1x16x494xf32> to vector<16x494xf32>
    %cst_25 = arith.constant dense<0.000000e+00> : vector<2x16xf32>
    %37 = tpu.matmul %34, %36, %cst_25 {dimension_numbers = #tpu.dot_dimension_numbers<[1], [1], [0], [0], [0, 0, 1, 0], [], []>} : vector<2x494xf32>, vector<16x494xf32>, vector<2x16xf32> -> vector<2x16xf32>
    %38 = arith.addf %33, %37 : vector<2x16xf32>
    %c0_26 = arith.constant 0 : index
    %c0_27 = arith.constant 0 : index
    %39 = vector.load %arg4[%c0_26, %c0_27] : memref<1x16xf32, #tpu.memory_space<vmem>>, vector<1x16xf32>
    %40 = vector.broadcast %39 : vector<1x16xf32> to vector<2x16xf32>
    %41 = arith.addf %38, %40 : vector<2x16xf32>
    %cst_28 = arith.constant 0.000000e+00 : f32
    %42 = vector.broadcast %cst_28 : f32 to vector<2x16xf32>
    %43 = arith.maximumf %41, %42 : vector<2x16xf32>
    %c0_29 = arith.constant 0 : index
    %c0_30 = arith.constant 0 : index
    %44 = vector.load %arg5[%c0_29, %c0_30] : memref<16x64xf32, #tpu.memory_space<vmem>>, vector<16x64xf32>
    %cst_31 = arith.constant dense<0.000000e+00> : vector<2x64xf32>
    %45 = tpu.matmul %43, %44, %cst_31 {dimension_numbers = #tpu.dot_dimension_numbers<[1], [0], [0], [1], [0, 0, 1, 1], [], []>} : vector<2x16xf32>, vector<16x64xf32>, vector<2x64xf32> -> vector<2x64xf32>
    %c0_32 = arith.constant 0 : index
    %c0_33 = arith.constant 0 : index
    %46 = vector.load %arg6[%c0_32, %c0_33] : memref<1x64xf32, #tpu.memory_space<vmem>>, vector<1x64xf32>
    %47 = vector.broadcast %46 : vector<1x64xf32> to vector<2x64xf32>
    %48 = arith.addf %45, %47 : vector<2x64xf32>
    %cst_34 = arith.constant 0.000000e+00 : f32
    %49 = vector.broadcast %cst_34 : f32 to vector<2x64xf32>
    %50 = arith.maximumf %48, %49 : vector<2x64xf32>
    %c0_35 = arith.constant 0 : index
    %c0_36 = arith.constant 0 : index
    %51 = vector.load %arg7[%c0_35, %c0_36] : memref<64x1xf32, #tpu.memory_space<vmem>>, vector<64x1xf32>
    %cst_37 = arith.constant dense<0.000000e+00> : vector<2x1xf32>
    %52 = tpu.matmul %50, %51, %cst_37 {dimension_numbers = #tpu.dot_dimension_numbers<[1], [0], [0], [1], [0, 0, 1, 1], [], []>} : vector<2x64xf32>, vector<64x1xf32>, vector<2x1xf32> -> vector<2x1xf32>
    %c0_38 = arith.constant 0 : index
    %c0_39 = arith.constant 0 : index
    %53 = vector.load %arg8[%c0_38, %c0_39] : memref<1x1xf32, #tpu.memory_space<vmem>>, vector<1x1xf32>
    %54 = vector.broadcast %53 : vector<1x1xf32> to vector<2x1xf32>
    %55 = arith.addf %52, %54 : vector<2x1xf32>
    %c0_40 = arith.constant 0 : index
    %c0_41 = arith.constant 0 : index
    %56 = vector.load %arg9[%c0_40, %c0_41] : memref<2x1xf32, #tpu.memory_space<vmem>>, vector<2x1xf32>
    tpu.vector_store %arg9[%c0_40, %c0_41], %55 {strides = array<i32>} : memref<2x1xf32, #tpu.memory_space<vmem>>, vector<2x1xf32>,
    return
  }
}

</mosaic_0001>

<llo_original>
// kernel: tpu_custom_call.1
$region0: #{tpu_custom_call.1}
  #allocation0 [shape = 'u32[]', space=smem, size = 0x4, offset = 0x4, fixed_abs, tag = 'smem constant byte address 0x4 - core index']
  #allocation1 [shape = 'u32[144,128]{1,0:T(1,128)}', space=vmem, size = 0x12000, scoped, tag = 'internal scratch']
  #allocation2 [shape = 'f32[1,1]{1,0:T(1,128)S(1)}', space=vmem, size = 0x200, scoped, tag = 'scoped memory for tpu_custom_call.1']
  %s0 = inlined_call_operand.hbm [shape: f32[42,494], index: 0, kind: input, shape index: {}]
  %s1 = inlined_call_operand.vmem [shape: f32[12,42], index: 1, kind: input, shape index: {}]
  %s2 = inlined_call_operand.vmem [shape: f32[12,1], index: 2, kind: input, shape index: {}]
  %s3 = inlined_call_operand.hbm [shape: f32[6,16,494], index: 3, kind: input, shape index: {}]
  %s4 = inlined_call_operand.vmem [shape: f32[1,16], index: 4, kind: input, shape index: {}]
  %s5 = inlined_call_operand.vmem [shape: f32[16,64], index: 5, kind: input, shape index: {}]
  %s6 = inlined_call_operand.vmem [shape: f32[1,64], index: 6, kind: input, shape index: {}]
  %s7 = inlined_call_operand.vmem [shape: f32[64,1], index: 7, kind: input, shape index: {}]
  %s8 = inlined_call_operand.<no memory space> [shape: f32[1,1], index: 8, kind: input, shape index: {}]
  %s9 = inlined_call_operand.vmem [shape: f32[2,1], index: 9, kind: output, shape index: {}]
  %s10 = sld [smem:[#allocation0]]
  $region54: #{tpu_custom_call.1} parent=0
    _
  %s12 = ssub.s32 1, %s10
  %s13 = scalar_select 0, %s12, %s10
  %v14 = vstv %s8
  %15 = vst [vmem:[#allocation2] sm:$0x1] %v14
  $region1: #{tpu_custom_call.1} parent=0
    #allocation3 [shape = 'u8[98304]{0}', space=vmem, size = 0x18000, scoped, tag = 'input window, operand 0, single buffered']
    #allocation4 [shape = 's32[1]{0}', space=sflag, size = 0x4, scoped, tag = 'scoped memory for tpu_custom_call.1']
    #allocation5 [shape = 'u8[196608]{0}', space=vmem, size = 0x30000, scoped, tag = 'input window, operand 3, single buffered']
    #allocation6 [shape = 's32[1]{0}', space=sflag, size = 0x4, scoped, tag = 'scoped memory for tpu_custom_call.1']
    %16 = vsyncpa [#allocation4], 0
    %17 = vsyncpa [#allocation6], 0
    // Predicated region
    $region2: #{tpu_custom_call.1} parent=1 // pred_check
      _
    $region3: #{tpu_custom_call.1} parent=1 // pred_check_branch
      %19 = sbr.rel (0) target = $region5
    $region4: #{tpu_custom_call.1} parent=1 // pred_region
      %s21 = ssub.s32 3072, 3072
      %22 = vsyncadd [#allocation4], %s21
      %s23 = sshll.u32 [#allocation3], 4
      %s24 = int_to_ptr.vmem [resolvable:$true] %s23
      %29 = dma.hbm_to_vmem [thread:$0]  %s0, 3072, %s24, [#allocation4], 512, 512, 32
    $region5: #{tpu_custom_call.1} parent=1 // pred_fallthru
      _
    // Predicated region
    $region6: #{tpu_custom_call.1} parent=1 // pred_check
      _
    $region7: #{tpu_custom_call.1} parent=1 // pred_check_branch
      %31 = sbr.rel (0) target = $region9
    $region8: #{tpu_custom_call.1} parent=1 // pred_region
      _
    $region9: #{tpu_custom_call.1} parent=1 // pred_fallthru
      _
    // Predicated region
    $region10: #{tpu_custom_call.1} parent=1 // pred_check
      _
    $region11: #{tpu_custom_call.1} parent=1 // pred_check_branch
      %33 = sbr.rel (0) target = $region13
    $region12: #{tpu_custom_call.1} parent=1 // pred_region
      _
    $region13: #{tpu_custom_call.1} parent=1 // pred_fallthru
      _
    // Predicated region
    $region14: #{tpu_custom_call.1} parent=1 // pred_check
      _
    $region15: #{tpu_custom_call.1} parent=1 // pred_check_branch
      %35 = sbr.rel (0) target = $region17
    $region16: #{tpu_custom_call.1} parent=1 // pred_region
      %s37 = ssub.s32 6144, 6144
      %38 = vsyncadd [#allocation6], %s37
      %s39 = sshll.u32 [#allocation5], 4
      %s40 = int_to_ptr.vmem [resolvable:$true] %s39
      %45 = dma.hbm_to_vmem [thread:$0]  %s3, 6144, %s40, [#allocation6], 512, 512, 32
    $region17: #{tpu_custom_call.1} parent=1 // pred_fallthru
      _
    // Predicated region
    $region18: #{tpu_custom_call.1} parent=1 // pred_check
      _
    $region19: #{tpu_custom_call.1} parent=1 // pred_check_branch
      %47 = sbr.rel (0) target = $region21
    $region20: #{tpu_custom_call.1} parent=1 // pred_region
      _
    $region21: #{tpu_custom_call.1} parent=1 // pred_fallthru
      _
    // Predicated region
    $region22: #{tpu_custom_call.1} parent=1 // pred_check
      _
    $region23: #{tpu_custom_call.1} parent=1 // pred_check_branch
      %49 = sbr.rel (0) target = $region25
    $region24: #{tpu_custom_call.1} parent=1 // pred_region
      _
    $region25: #{tpu_custom_call.1} parent=1 // pred_fallthru
      _
    // Predicated region
    $region26: #{tpu_custom_call.1} parent=1 // pred_check
      _
    $region27: #{tpu_custom_call.1} parent=1 // pred_check_branch
      %51 = sbr.rel (0) target = $region29
    $region28: #{tpu_custom_call.1} parent=1 // pred_region
      _
    $region29: #{tpu_custom_call.1} parent=1 // pred_fallthru
      _
    // Predicated region
    $region30: #{tpu_custom_call.1} parent=1 // pred_check
      _
    $region31: #{tpu_custom_call.1} parent=1 // pred_check_branch
      %53 = sbr.rel (0) target = $region33
    $region32: #{tpu_custom_call.1} parent=1 // pred_region
      _
    $region33: #{tpu_custom_call.1} parent=1 // pred_fallthru
      _
    // Predicated region
    $region34: #{tpu_custom_call.1} parent=1 // pred_check
      _
    $region35: #{tpu_custom_call.1} parent=1 // pred_check_branch
      %55 = sbr.rel (0) target = $region37
    $region36: #{tpu_custom_call.1} parent=1 // pred_region
      _
    $region37: #{tpu_custom_call.1} parent=1 // pred_fallthru
      _
    // Predicated region
    $region38: #{tpu_custom_call.1} parent=1 // pred_check
      _
    $region39: #{tpu_custom_call.1} parent=1 // pred_check_branch
      %57 = sbr.rel (0) target = $region41
    $region40: #{tpu_custom_call.1} parent=1 // pred_region
      %58 = dma.done [#allocation4], 3072
    $region41: #{tpu_custom_call.1} parent=1 // pred_fallthru
      _
    // Predicated region
    $region42: #{tpu_custom_call.1} parent=1 // pred_check
      _
    $region43: #{tpu_custom_call.1} parent=1 // pred_check_branch
      %60 = sbr.rel (0) target = $region45
    $region44: #{tpu_custom_call.1} parent=1 // pred_region
      %61 = dma.done [#allocation6], 6144
    $region45: #{tpu_custom_call.1} parent=1 // pred_fallthru
      _
    %v62 = vld [vmem:[%s1] sm:$0xff]
    %v63 = vld [vmem:[%s1 + $0x8] sm:$0xf]
    %v64 = vld [vmem:[#allocation3] sm:$0xff]
    %v65 = vld [vmem:[#allocation3 + $0x8] sm:$0xff]
    %v66 = vld [vmem:[#allocation3 + $0x10] sm:$0xff]
    %v67 = vld [vmem:[#allocation3 + $0x18] sm:$0xff]
    %v68 = vld [vmem:[#allocation3 + $0x20] sm:$0xff]
    %v69 = vld [vmem:[#allocation3 + $0x28] sm:$0xff]
    %v70 = vld [vmem:[#allocation3 + $0x30] sm:$0xff]
    %v71 = vld [vmem:[#allocation3 + $0x38] sm:$0xff]
    %v72 = vld [vmem:[#allocation3 + $0x40] sm:$0xff]
    %v73 = vld [vmem:[#allocation3 + $0x48] sm:$0xff]
    %v74 = vld [vmem:[#allocation3 + $0x50] sm:$0xff]
    %v75 = vld [vmem:[#allocation3 + $0x58] sm:$0xff]
    %v76 = vld [vmem:[#allocation3 + $0x60] sm:$0xff]
    %v77 = vld [vmem:[#allocation3 + $0x68] sm:$0xff]
    %v78 = vld [vmem:[#allocation3 + $0x70] sm:$0xff]
    %v79 = vld [vmem:[#allocation3 + $0x78] sm:$0xff]
    %v80 = vld [vmem:[#allocation3 + $0x80] sm:$0xff]
    %v81 = vld [vmem:[#allocation3 + $0x88] sm:$0xff]
    %v82 = vld [vmem:[#allocation3 + $0x90] sm:$0xff]
    %v83 = vld [vmem:[#allocation3 + $0x98] sm:$0xff]
    %v84 = vld [vmem:[#allocation3 + $0xa0] sm:$0x3]
    %v85 = vld [vmem:[#allocation3 + $0xa8] sm:$0x3]
    %v86 = vld [vmem:[#allocation3 + $0xb0] sm:$0x3]
    %v87 = vld [vmem:[#allocation3 + $0xb8] sm:$0x3]
    %v88 = vld [vmem:[%s2] sm:$0xff]
    %v89 = vld [vmem:[%s2 + $0x8] sm:$0xf]
    %91 = vset.pattern.permute.xlu0 0
    %92 = vperm.xlu0 %91, %v88
    %v93 = vpop.permute.xlu0 %92
    %96 = vset.pattern.permute.xlu0 0
    %97 = vperm.xlu0 %96, %v89
    %v98 = vpop.permute.xlu0 %97
    %vm100 = vcmask 343040
    %v102 = vsel %vm100, %v62, 0
    %v105 = vsel %vm100, %v63, 0
    %vm107 = vcmask 1041408
    %v109 = vsel %vm107, %v84, 0
    %v112 = vsel %vm107, %v85, 0
    %v115 = vsel %vm107, %v86, 0
    %v118 = vsel %vm107, %v87, 0
    %120 = vmatprep.subr.mxu0 %v65
    %121 = vmatpush1.msra.mxu0 %v64
    %122 = vmatprep.subr.mxu0 %v69
    %123 = vmatpush1.msra.mxu0 %v68
    %124 = vmatprep.subr.mxu0 %v73
    %125 = vmatpush1.msra.mxu0 %v72
    %126 = vmatprep.subr.mxu0 %v77
    %127 = vmatpush1.msra.mxu0 %v76
    %128 = vmatprep.subr.mxu0 %v81
    %129 = vmatpush1.msra.mxu0 %v80
    %130 = vmatprep.subr.mxu0 %v112
    %131 = vmatpush1.msra.mxu0 %v109
    %132 = vmatprep.subr.mxu0 0.0
    %133 = vmatpush1.msra.mxu0 0.0
    %134 = vmatprep.subr.mxu0 0.0
    %135 = vmatpush1.msra.mxu0 0.0
    %136 = vmatprep.subr.mxu0 0.0
    %137 = vmatpush1.msra.mxu0 0.0
    %138 = vmatprep.subr.mxu0 0.0
    %139 = vmatpush1.msra.mxu0 0.0
    %140 = vmatprep.subr.mxu0 0.0
    %141 = vmatpush1.msra.mxu0 0.0
    %142 = vmatprep.subr.mxu0 0.0
    %143 = vmatpush1.msra.mxu0 0.0
    %144 = vmatprep.subr.mxu0 0.0
    %145 = vmatpush1.msra.mxu0 0.0
    %146 = vmatprep.subr.mxu0 0.0
    %147 = vmatpush1.msra.mxu0 0.0
    %148 = vmatprep.subr.mxu0 0.0
    %149 = vmatpush1.msra.mxu0 0.0
    %150 = vmatprep.subr.mxu0 0.0
    %151 = vmatpush1.msra.mxu0 0.0
    %152 = vmatprep.subr.mxu0 0.0
    %153 = vmatpush1.msra.mxu0 0.0
    %154 = vmatprep.subr.mxu0 0.0
    %155 = vmatpush1.msra.mxu0 0.0
    %156 = vmatprep.subr.mxu0 0.0
    %157 = vmatpush1.msra.mxu0 0.0
    %158 = vmatprep.subr.mxu0 0.0
    %159 = vmatpush1.msra.mxu0 0.0
    %160 = vmatprep.subr.mxu0 0.0
    %161 = vmatpush1.msra.mxu0 0.0
    %162 = vmatprep.subr.mxu0 0.0
    %163 = vmatpush1.msra.mxu0 0.0
    %164 = vmatprep.subr.mxu0 0.0
    %165 = vmatpush1.msra.mxu0 0.0
    %166 = vmatprep.subr.mxu0 0.0
    %167 = vmatpush1.msra.mxu0 0.0
    %168 = vmatprep.subr.mxu0 0.0
    %169 = vmatpush1.msra.mxu0 0.0
    %170 = vmatprep.subr.mxu0 0.0
    %171 = vmatpush1.msra.mxu0 0.0
    %172 = vmatprep.subr.mxu0 0.0
    %173 = vmatpush1.msra.mxu0 0.0
    %174 = vmatprep.subr.mxu0 0.0
    %175 = vmatpush1.msra.mxu0 0.0
    %176 = vmatprep.subr.mxu0 0.0
    %177 = vmatpush1.msra.mxu0 0.0
    %178 = vmatprep.subr.mxu0 0.0
    %179 = vmatpush1.msra.mxu0 0.0
    %180 = vmatprep.subr.mxu0 0.0
    %181 = vmatpush1.msra.mxu0 0.0
    %182 = vmatprep.subr.mxu0 0.0
    %183 = vmatpush1.msra.mxu0 0.0
    %184 = vmatprep.mubr.f32.mxu0 0.0
    %185 = vmatmul.mubr.f32.gmra.mrb[0].mxu0 %v102
    %v186 = vpop.f32.mrb[0].mxu0
    %v187 = vadd.f32 %v93, %v186
    %v188 = vpop.f32.mrb[0].mxu0
    %v189 = vadd.f32 %v93, %v188
    %190 = vmatprep.mubr.f32.mxu0 0.0
    %191 = vmatmul.mubr.f32.gmra.mrb[0].mxu0 %v105
    %v192 = vpop.f32.mrb[0].mxu0
    %v193 = vadd.f32 %v98, %v192
    %v194 = vpop.f32.mrb[0].mxu0
    %v195 = vadd.f32 %v98, %v194
    %196 = vdwg.mxu0
    %197 = vmatprep.subr.mxu0 %v67
    %198 = vmatpush1.msra.mxu0 %v66
    %199 = vmatprep.subr.mxu0 %v71
    %200 = vmatpush1.msra.mxu0 %v70
    %201 = vmatprep.subr.mxu0 %v75
    %202 = vmatpush1.msra.mxu0 %v74
    %203 = vmatprep.subr.mxu0 %v79
    %204 = vmatpush1.msra.mxu0 %v78
    %205 = vmatprep.subr.mxu0 %v83
    %206 = vmatpush1.msra.mxu0 %v82
    %207 = vmatprep.subr.mxu0 %v118
    %208 = vmatpush1.msra.mxu0 %v115
    %209 = vmatprep.subr.mxu0 0.0
    %210 = vmatpush1.msra.mxu0 0.0
    %211 = vmatprep.subr.mxu0 0.0
    %212 = vmatpush1.msra.mxu0 0.0
    %213 = vmatprep.subr.mxu0 0.0
    %214 = vmatpush1.msra.mxu0 0.0
    %215 = vmatprep.subr.mxu0 0.0
    %216 = vmatpush1.msra.mxu0 0.0
    %217 = vmatprep.subr.mxu0 0.0
    %218 = vmatpush1.msra.mxu0 0.0
    %219 = vmatprep.subr.mxu0 0.0
    %220 = vmatpush1.msra.mxu0 0.0
    %221 = vmatprep.subr.mxu0 0.0
    %222 = vmatpush1.msra.mxu0 0.0
    %223 = vmatprep.subr.mxu0 0.0
    %224 = vmatpush1.msra.mxu0 0.0
    %225 = vmatprep.subr.mxu0 0.0
    %226 = vmatpush1.msra.mxu0 0.0
    %227 = vmatprep.subr.mxu0 0.0
    %228 = vmatpush1.msra.mxu0 0.0
    %229 = vmatprep.subr.mxu0 0.0
    %230 = vmatpush1.msra.mxu0 0.0
    %231 = vmatprep.subr.mxu0 0.0
    %232 = vmatpush1.msra.mxu0 0.0
    %233 = vmatprep.subr.mxu0 0.0
    %234 = vmatpush1.msra.mxu0 0.0
    %235 = vmatprep.subr.mxu0 0.0
    %236 = vmatpush1.msra.mxu0 0.0
    %237 = vmatprep.subr.mxu0 0.0
    %238 = vmatpush1.msra.mxu0 0.0
    %239 = vmatprep.subr.mxu0 0.0
    %240 = vmatpush1.msra.mxu0 0.0
    %241 = vmatprep.subr.mxu0 0.0
    %242 = vmatpush1.msra.mxu0 0.0
    %243 = vmatprep.subr.mxu0 0.0
    %244 = vmatpush1.msra.mxu0 0.0
    %245 = vmatprep.subr.mxu0 0.0
    %246 = vmatpush1.msra.mxu0 0.0
    %247 = vmatprep.subr.mxu0 0.0
    %248 = vmatpush1.msra.mxu0 0.0
    %249 = vmatprep.subr.mxu0 0.0
    %250 = vmatpush1.msra.mxu0 0.0
    %251 = vmatprep.subr.mxu0 0.0
    %252 = vmatpush1.msra.mxu0 0.0
    %253 = vmatprep.subr.mxu0 0.0
    %254 = vmatpush1.msra.mxu0 0.0
    %255 = vmatprep.subr.mxu0 0.0
    %256 = vmatpush1.msra.mxu0 0.0
    %257 = vmatprep.subr.mxu0 0.0
    %258 = vmatpush1.msra.mxu0 0.0
    %259 = vmatprep.subr.mxu0 0.0
    %260 = vmatpush1.msra.mxu0 0.0
    %261 = vmatprep.mubr.f32.mxu0 0.0
    %262 = vmatmul.mubr.f32.gmra.mrb[0].mxu0 %v102
    %v263 = vpop.f32.mrb[0].mxu0
    %v264 = vadd.f32 %v93, %v263
    %v265 = vpop.f32.mrb[0].mxu0
    %v266 = vadd.f32 %v93, %v265
    %267 = vmatprep.mubr.f32.mxu0 0.0
    %268 = vmatmul.mubr.f32.gmra.mrb[0].mxu0 %v105
    %v269 = vpop.f32.mrb[0].mxu0
    %v270 = vadd.f32 %v98, %v269
    %v271 = vpop.f32.mrb[0].mxu0
    %v272 = vadd.f32 %v98, %v271
    %273 = vdwg.mxu0
    %v274 = vmax.f32 %v187, 0.0
    %v275 = vmax.f32 %v189, 0.0
    %v276 = vmax.f32 %v264, 0.0
    %v277 = vmax.f32 %v266, 0.0
    %v278 = vmax.f32 %v193, 0.0
    %v279 = vmax.f32 %v195, 0.0
    %v280 = vmax.f32 %v270, 0.0
    %v281 = vmax.f32 %v272, 0.0
    %v282 = vld [vmem:[#allocation5] sm:$0xff]
    %v283 = vld [vmem:[#allocation5 + $0x8] sm:$0xff]
    %v284 = vld [vmem:[#allocation5 + $0x10] sm:$0xff]
    %v285 = vld [vmem:[#allocation5 + $0x18] sm:$0xff]
    %v286 = vld [vmem:[#allocation5 + $0x20] sm:$0xff]
    %v287 = vld [vmem:[#allocation5 + $0x28] sm:$0xff]
    %v288 = vld [vmem:[#allocation5 + $0x30] sm:$0xff]
    %v289 = vld [vmem:[#allocation5 + $0x38] sm:$0xff]
    %s290 = scalar_lea.vmem [#allocation5], 64
    %v291 = vld [vmem:[%s290] sm:$0xff]
    %v292 = vld [vmem:[%s290 + $0x8] sm:$0xff]
    %v293 = vld [vmem:[%s290 + $0x10] sm:$0xff]
    %v294 = vld [vmem:[%s290 + $0x18] sm:$0xff]
    %v295 = vld [vmem:[%s290 + $0x20] sm:$0xff]
    %v296 = vld [vmem:[%s290 + $0x28] sm:$0xff]
    %v297 = vld [vmem:[%s290 + $0x30] sm:$0xff]
    %v298 = vld [vmem:[%s290 + $0x38] sm:$0xff]
    %v303 = vrot.slane %v274, 2
    %v304 = vrot.slane %v275, 2
    %v305 = vrot.slane %v276, 2
    %v306 = vrot.slane %v277, 2
    %vm310 = vcmask 900096
    %v311 = vsel %vm310, %v306, 0
    %v314 = vsel %vm310, %v294, 0
    %v317 = vsel %vm310, %v298, 0
    %319 = vmatprep.subr.mxu0 %v292
    %320 = vmatpush1.xpose.msra.mxu0 %v291
    %321 = vmatprep.subr.mxu0 %v296
    %322 = vmatpush1.xpose.msra.mxu0 %v295
    %323 = vmatprep.subr.mxu0 0.0
    %324 = vmatpush1.xpose.msra.mxu0 0.0
    %325 = vmatprep.subr.mxu0 0.0
    %326 = vmatpush1.xpose.msra.mxu0 0.0
    %327 = vmatprep.subr.mxu0 0.0
    %328 = vmatpush1.xpose.msra.mxu0 0.0
    %329 = vmatprep.subr.mxu0 0.0
    %330 = vmatpush1.xpose.msra.mxu0 0.0
    %331 = vmatprep.subr.mxu0 0.0
    %332 = vmatpush1.xpose.msra.mxu0 0.0
    %333 = vmatprep.subr.mxu0 0.0
    %334 = vmatpush1.xpose.msra.mxu0 0.0
    %335 = vmatprep.subr.mxu0 0.0
    %336 = vmatpush1.xpose.msra.mxu0 0.0
    %337 = vmatprep.subr.mxu0 0.0
    %338 = vmatpush1.xpose.msra.mxu0 0.0
    %339 = vmatprep.subr.mxu0 0.0
    %340 = vmatpush1.xpose.msra.mxu0 0.0
    %341 = vmatprep.subr.mxu0 0.0
    %342 = vmatpush1.xpose.msra.mxu0 0.0
    %343 = vmatprep.subr.mxu0 0.0
    %344 = vmatpush1.xpose.msra.mxu0 0.0
    %345 = vmatprep.subr.mxu0 0.0
    %346 = vmatpush1.xpose.msra.mxu0 0.0
    %347 = vmatprep.subr.mxu0 0.0
    %348 = vmatpush1.xpose.msra.mxu0 0.0
    %349 = vmatprep.subr.mxu0 0.0
    %350 = vmatpush1.xpose.msra.mxu0 0.0
    %351 = vmatprep.subr.mxu0 0.0
    %352 = vmatpush1.xpose.msra.mxu0 0.0
    %353 = vmatprep.subr.mxu0 0.0
    %354 = vmatpush1.xpose.msra.mxu0 0.0
    %355 = vmatprep.subr.mxu0 0.0
    %356 = vmatpush1.xpose.msra.mxu0 0.0
    %357 = vmatprep.subr.mxu0 0.0
    %358 = vmatpush1.xpose.msra.mxu0 0.0
    %359 = vmatprep.subr.mxu0 0.0
    %360 = vmatpush1.xpose.msra.mxu0 0.0
    %361 = vmatprep.subr.mxu0 0.0
    %362 = vmatpush1.xpose.msra.mxu0 0.0
    %363 = vmatprep.subr.mxu0 0.0
    %364 = vmatpush1.xpose.msra.mxu0 0.0
    %365 = vmatprep.subr.mxu0 0.0
    %366 = vmatpush1.xpose.msra.mxu0 0.0
    %367 = vmatprep.subr.mxu0 0.0
    %368 = vmatpush1.xpose.msra.mxu0 0.0
    %369 = vmatprep.subr.mxu0 0.0
    %370 = vmatpush1.xpose.msra.mxu0 0.0
    %371 = vmatprep.subr.mxu0 0.0
    %372 = vmatpush1.xpose.msra.mxu0 0.0
    %373 = vmatprep.subr.mxu0 0.0
    %374 = vmatpush1.xpose.msra.mxu0 0.0
    %375 = vmatprep.subr.mxu0 0.0
    %376 = vmatpush1.xpose.msra.mxu0 0.0
    %377 = vmatprep.subr.mxu0 0.0
    %378 = vmatpush1.xpose.msra.mxu0 0.0
    %379 = vmatprep.subr.mxu0 0.0
    %380 = vmatpush1.xpose.msra.mxu0 0.0
    %381 = vmatprep.subr.mxu0 0.0
    %382 = vmatpush1.xpose.msra.mxu0 0.0
    %383 = vmatprep.mubr.f32.mxu0 %v304
    %384 = vmatmul.mubr.f32.gmra.mrb[0].mxu0 %v303
    %v385 = vpop.f32.mrb[0].mxu0
    %v386 = vadd.f32 0.0, %v385
    %v387 = vpop.f32.mrb[0].mxu0
    %388 = vdwg.mxu0
    %389 = vmatprep.subr.mxu0 %v314
    %390 = vmatpush1.xpose.msra.mxu0 %v293
    %391 = vmatprep.subr.mxu0 %v317
    %392 = vmatpush1.xpose.msra.mxu0 %v297
    %393 = vmatprep.subr.mxu0 0.0
    %394 = vmatpush1.xpose.msra.mxu0 0.0
    %395 = vmatprep.subr.mxu0 0.0
    %396 = vmatpush1.xpose.msra.mxu0 0.0
    %397 = vmatprep.subr.mxu0 0.0
    %398 = vmatpush1.xpose.msra.mxu0 0.0
    %399 = vmatprep.subr.mxu0 0.0
    %400 = vmatpush1.xpose.msra.mxu0 0.0
    %401 = vmatprep.subr.mxu0 0.0
    %402 = vmatpush1.xpose.msra.mxu0 0.0
    %403 = vmatprep.subr.mxu0 0.0
    %404 = vmatpush1.xpose.msra.mxu0 0.0
    %405 = vmatprep.subr.mxu0 0.0
    %406 = vmatpush1.xpose.msra.mxu0 0.0
    %407 = vmatprep.subr.mxu0 0.0
    %408 = vmatpush1.xpose.msra.mxu0 0.0
    %409 = vmatprep.subr.mxu0 0.0
    %410 = vmatpush1.xpose.msra.mxu0 0.0
    %411 = vmatprep.subr.mxu0 0.0
    %412 = vmatpush1.xpose.msra.mxu0 0.0
    %413 = vmatprep.subr.mxu0 0.0
    %414 = vmatpush1.xpose.msra.mxu0 0.0
    %415 = vmatprep.subr.mxu0 0.0
    %416 = vmatpush1.xpose.msra.mxu0 0.0
    %417 = vmatprep.subr.mxu0 0.0
    %418 = vmatpush1.xpose.msra.mxu0 0.0
    %419 = vmatprep.subr.mxu0 0.0
    %420 = vmatpush1.xpose.msra.mxu0 0.0
    %421 = vmatprep.subr.mxu0 0.0
    %422 = vmatpush1.xpose.msra.mxu0 0.0
    %423 = vmatprep.subr.mxu0 0.0
    %424 = vmatpush1.xpose.msra.mxu0 0.0
    %425 = vmatprep.subr.mxu0 0.0
    %426 = vmatpush1.xpose.msra.mxu0 0.0
    %427 = vmatprep.subr.mxu0 0.0
    %428 = vmatpush1.xpose.msra.mxu0 0.0
    %429 = vmatprep.subr.mxu0 0.0
    %430 = vmatpush1.xpose.msra.mxu0 0.0
    %431 = vmatprep.subr.mxu0 0.0
    %432 = vmatpush1.xpose.msra.mxu0 0.0
    %433 = vmatprep.subr.mxu0 0.0
    %434 = vmatpush1.xpose.msra.mxu0 0.0
    %435 = vmatprep.subr.mxu0 0.0
    %436 = vmatpush1.xpose.msra.mxu0 0.0
    %437 = vmatprep.subr.mxu0 0.0
    %438 = vmatpush1.xpose.msra.mxu0 0.0
    %439 = vmatprep.subr.mxu0 0.0
    %440 = vmatpush1.xpose.msra.mxu0 0.0
    %441 = vmatprep.subr.mxu0 0.0
    %442 = vmatpush1.xpose.msra.mxu0 0.0
    %443 = vmatprep.subr.mxu0 0.0
    %444 = vmatpush1.xpose.msra.mxu0 0.0
    %445 = vmatprep.subr.mxu0 0.0
    %446 = vmatpush1.xpose.msra.mxu0 0.0
    %447 = vmatprep.subr.mxu0 0.0
    %448 = vmatpush1.xpose.msra.mxu0 0.0
    %449 = vmatprep.subr.mxu0 0.0
    %450 = vmatpush1.xpose.msra.mxu0 0.0
    %451 = vmatprep.subr.mxu0 0.0
    %452 = vmatpush1.xpose.msra.mxu0 0.0
    %453 = vmatprep.mubr.f32.mxu0 %v311
    %454 = vmatmul.mubr.f32.gmra.mrb[0].mxu0 %v305
    %v455 = vpop.f32.mrb[0].mxu0
    %v456 = vadd.f32 %v386, %v455
    %v457 = vpop.f32.mrb[0].mxu0
    %458 = vdwg.mxu0
    %v459 = vsel %vm310, %v277, 0
    %v462 = vsel %vm310, %v285, 0
    %v465 = vsel %vm310, %v289, 0
    %467 = vmatprep.subr.mxu0 %v283
    %468 = vmatpush1.xpose.msra.mxu0 %v282
    %469 = vmatprep.subr.mxu0 %v287
    %470 = vmatpush1.xpose.msra.mxu0 %v286
    %471 = vmatprep.subr.mxu0 0.0
    %472 = vmatpush1.xpose.msra.mxu0 0.0
    %473 = vmatprep.subr.mxu0 0.0
    %474 = vmatpush1.xpose.msra.mxu0 0.0
    %475 = vmatprep.subr.mxu0 0.0
    %476 = vmatpush1.xpose.msra.mxu0 0.0
    %477 = vmatprep.subr.mxu0 0.0
    %478 = vmatpush1.xpose.msra.mxu0 0.0
    %479 = vmatprep.subr.mxu0 0.0
    %480 = vmatpush1.xpose.msra.mxu0 0.0
    %481 = vmatprep.subr.mxu0 0.0
    %482 = vmatpush1.xpose.msra.mxu0 0.0
    %483 = vmatprep.subr.mxu0 0.0
    %484 = vmatpush1.xpose.msra.mxu0 0.0
    %485 = vmatprep.subr.mxu0 0.0
    %486 = vmatpush1.xpose.msra.mxu0 0.0
    %487 = vmatprep.subr.mxu0 0.0
    %488 = vmatpush1.xpose.msra.mxu0 0.0
    %489 = vmatprep.subr.mxu0 0.0
    %490 = vmatpush1.xpose.msra.mxu0 0.0
    %491 = vmatprep.subr.mxu0 0.0
    %492 = vmatpush1.xpose.msra.mxu0 0.0
    %493 = vmatprep.subr.mxu0 0.0
    %494 = vmatpush1.xpose.msra.mxu0 0.0
    %495 = vmatprep.subr.mxu0 0.0
    %496 = vmatpush1.xpose.msra.mxu0 0.0
    %497 = vmatprep.subr.mxu0 0.0
    %498 = vmatpush1.xpose.msra.mxu0 0.0
    %499 = vmatprep.subr.mxu0 0.0
    %500 = vmatpush1.xpose.msra.mxu0 0.0
    %501 = vmatprep.subr.mxu0 0.0
    %502 = vmatpush1.xpose.msra.mxu0 0.0
    %503 = vmatprep.subr.mxu0 0.0
    %504 = vmatpush1.xpose.msra.mxu0 0.0
    %505 = vmatprep.subr.mxu0 0.0
    %506 = vmatpush1.xpose.msra.mxu0 0.0
    %507 = vmatprep.subr.mxu0 0.0
    %508 = vmatpush1.xpose.msra.mxu0 0.0
    %509 = vmatprep.subr.mxu0 0.0
    %510 = vmatpush1.xpose.msra.mxu0 0.0
    %511 = vmatprep.subr.mxu0 0.0
    %512 = vmatpush1.xpose.msra.mxu0 0.0
    %513 = vmatprep.subr.mxu0 0.0
    %514 = vmatpush1.xpose.msra.mxu0 0.0
    %515 = vmatprep.subr.mxu0 0.0
    %516 = vmatpush1.xpose.msra.mxu0 0.0
    %517 = vmatprep.subr.mxu0 0.0
    %518 = vmatpush1.xpose.msra.mxu0 0.0
    %519 = vmatprep.subr.mxu0 0.0
    %520 = vmatpush1.xpose.msra.mxu0 0.0
    %521 = vmatprep.subr.mxu0 0.0
    %522 = vmatpush1.xpose.msra.mxu0 0.0
    %523 = vmatprep.subr.mxu0 0.0
    %524 = vmatpush1.xpose.msra.mxu0 0.0
    %525 = vmatprep.subr.mxu0 0.0
    %526 = vmatpush1.xpose.msra.mxu0 0.0
    %527 = vmatprep.subr.mxu0 0.0
    %528 = vmatpush1.xpose.msra.mxu0 0.0
    %529 = vmatprep.subr.mxu0 0.0
    %530 = vmatpush1.xpose.msra.mxu0 0.0
    %531 = vmatprep.mubr.f32.mxu0 %v275
    %532 = vmatmul.mubr.f32.gmra.mrb[0].mxu0 %v274
    %v533 = vpop.f32.mrb[0].mxu0
    %v534 = vadd.f32 %v456, %v533
    %v535 = vpop.f32.mrb[0].mxu0
    %536 = vdwg.mxu0
    %537 = vmatprep.subr.mxu0 %v462
    %538 = vmatpush1.xpose.msra.mxu0 %v284
    %539 = vmatprep.subr.mxu0 %v465
    %540 = vmatpush1.xpose.msra.mxu0 %v288
    %541 = vmatprep.subr.mxu0 0.0
    %542 = vmatpush1.xpose.msra.mxu0 0.0
    %543 = vmatprep.subr.mxu0 0.0
    %544 = vmatpush1.xpose.msra.mxu0 0.0
    %545 = vmatprep.subr.mxu0 0.0
    %546 = vmatpush1.xpose.msra.mxu0 0.0
    %547 = vmatprep.subr.mxu0 0.0
    %548 = vmatpush1.xpose.msra.mxu0 0.0
    %549 = vmatprep.subr.mxu0 0.0
    %550 = vmatpush1.xpose.msra.mxu0 0.0
    %551 = vmatprep.subr.mxu0 0.0
    %552 = vmatpush1.xpose.msra.mxu0 0.0
    %553 = vmatprep.subr.mxu0 0.0
    %554 = vmatpush1.xpose.msra.mxu0 0.0
    %555 = vmatprep.subr.mxu0 0.0
    %556 = vmatpush1.xpose.msra.mxu0 0.0
    %557 = vmatprep.subr.mxu0 0.0
    %558 = vmatpush1.xpose.msra.mxu0 0.0
    %559 = vmatprep.subr.mxu0 0.0
    %560 = vmatpush1.xpose.msra.mxu0 0.0
    %561 = vmatprep.subr.mxu0 0.0
    %562 = vmatpush1.xpose.msra.mxu0 0.0
    %563 = vmatprep.subr.mxu0 0.0
    %564 = vmatpush1.xpose.msra.mxu0 0.0
    %565 = vmatprep.subr.mxu0 0.0
    %566 = vmatpush1.xpose.msra.mxu0 0.0
    %567 = vmatprep.subr.mxu0 0.0
    %568 = vmatpush1.xpose.msra.mxu0 0.0
    %569 = vmatprep.subr.mxu0 0.0
    %570 = vmatpush1.xpose.msra.mxu0 0.0
    %571 = vmatprep.subr.mxu0 0.0
    %572 = vmatpush1.xpose.msra.mxu0 0.0
    %573 = vmatprep.subr.mxu0 0.0
    %574 = vmatpush1.xpose.msra.mxu0 0.0
    %575 = vmatprep.subr.mxu0 0.0
    %576 = vmatpush1.xpose.msra.mxu0 0.0
    %577 = vmatprep.subr.mxu0 0.0
    %578 = vmatpush1.xpose.msra.mxu0 0.0
    %579 = vmatprep.subr.mxu0 0.0
    %580 = vmatpush1.xpose.msra.mxu0 0.0
    %581 = vmatprep.subr.mxu0 0.0
    %582 = vmatpush1.xpose.msra.mxu0 0.0
    %583 = vmatprep.subr.mxu0 0.0
    %584 = vmatpush1.xpose.msra.mxu0 0.0
    %585 = vmatprep.subr.mxu0 0.0
    %586 = vmatpush1.xpose.msra.mxu0 0.0
    %587 = vmatprep.subr.mxu0 0.0
    %588 = vmatpush1.xpose.msra.mxu0 0.0
    %589 = vmatprep.subr.mxu0 0.0
    %590 = vmatpush1.xpose.msra.mxu0 0.0
    %591 = vmatprep.subr.mxu0 0.0
    %592 = vmatpush1.xpose.msra.mxu0 0.0
    %593 = vmatprep.subr.mxu0 0.0
    %594 = vmatpush1.xpose.msra.mxu0 0.0
    %595 = vmatprep.subr.mxu0 0.0
    %596 = vmatpush1.xpose.msra.mxu0 0.0
    %597 = vmatprep.subr.mxu0 0.0
    %598 = vmatpush1.xpose.msra.mxu0 0.0
    %599 = vmatprep.subr.mxu0 0.0
    %600 = vmatpush1.xpose.msra.mxu0 0.0
    %601 = vmatprep.mubr.f32.mxu0 %v459
    %602 = vmatmul.mubr.f32.gmra.mrb[0].mxu0 %v276
    %v603 = vpop.f32.mrb[0].mxu0
    %v604 = vadd.f32 %v534, %v603
    %v605 = vpop.f32.mrb[0].mxu0
    %606 = vdwg.mxu0
    %s607 = scalar_lea.vmem [#allocation5], 128
    %v608 = vld [vmem:[%s607] sm:$0xff]
    %v609 = vld [vmem:[%s607 + $0x8] sm:$0xff]
    %v610 = vld [vmem:[%s607 + $0x10] sm:$0xff]
    %v611 = vld [vmem:[%s607 + $0x18] sm:$0xff]
    %v612 = vld [vmem:[%s607 + $0x20] sm:$0xff]
    %v613 = vld [vmem:[%s607 + $0x28] sm:$0xff]
    %v614 = vld [vmem:[%s607 + $0x30] sm:$0xff]
    %v615 = vld [vmem:[%s607 + $0x38] sm:$0xff]
    %v616 = vrot.slane %v274, 4
    %v617 = vrot.slane %v275, 4
    %v618 = vrot.slane %v276, 4
    %v619 = vrot.slane %v277, 4
    %v623 = vsel %vm310, %v619, 0
    %v626 = vsel %vm310, %v611, 0
    %v629 = vsel %vm310, %v615, 0
    %631 = vmatprep.subr.mxu0 %v609
    %632 = vmatpush1.xpose.msra.mxu0 %v608
    %633 = vmatprep.subr.mxu0 %v613
    %634 = vmatpush1.xpose.msra.mxu0 %v612
    %635 = vmatprep.subr.mxu0 0.0
    %636 = vmatpush1.xpose.msra.mxu0 0.0
    %637 = vmatprep.subr.mxu0 0.0
    %638 = vmatpush1.xpose.msra.mxu0 0.0
    %639 = vmatprep.subr.mxu0 0.0
    %640 = vmatpush1.xpose.msra.mxu0 0.0
    %641 = vmatprep.subr.mxu0 0.0
    %642 = vmatpush1.xpose.msra.mxu0 0.0
    %643 = vmatprep.subr.mxu0 0.0
    %644 = vmatpush1.xpose.msra.mxu0 0.0
    %645 = vmatprep.subr.mxu0 0.0
    %646 = vmatpush1.xpose.msra.mxu0 0.0
    %647 = vmatprep.subr.mxu0 0.0
    %648 = vmatpush1.xpose.msra.mxu0 0.0
    %649 = vmatprep.subr.mxu0 0.0
    %650 = vmatpush1.xpose.msra.mxu0 0.0
    %651 = vmatprep.subr.mxu0 0.0
    %652 = vmatpush1.xpose.msra.mxu0 0.0
    %653 = vmatprep.subr.mxu0 0.0
    %654 = vmatpush1.xpose.msra.mxu0 0.0
    %655 = vmatprep.subr.mxu0 0.0
    %656 = vmatpush1.xpose.msra.mxu0 0.0
    %657 = vmatprep.subr.mxu0 0.0
    %658 = vmatpush1.xpose.msra.mxu0 0.0
    %659 = vmatprep.subr.mxu0 0.0
    %660 = vmatpush1.xpose.msra.mxu0 0.0
    %661 = vmatprep.subr.mxu0 0.0
    %662 = vmatpush1.xpose.msra.mxu0 0.0
    %663 = vmatprep.subr.mxu0 0.0
    %664 = vmatpush1.xpose.msra.mxu0 0.0
    %665 = vmatprep.subr.mxu0 0.0
    %666 = vmatpush1.xpose.msra.mxu0 0.0
    %667 = vmatprep.subr.mxu0 0.0
    %668 = vmatpush1.xpose.msra.mxu0 0.0
    %669 = vmatprep.subr.mxu0 0.0
    %670 = vmatpush1.xpose.msra.mxu0 0.0
    %671 = vmatprep.subr.mxu0 0.0
    %672 = vmatpush1.xpose.msra.mxu0 0.0
    %673 = vmatprep.subr.mxu0 0.0
    %674 = vmatpush1.xpose.msra.mxu0 0.0
    %675 = vmatprep.subr.mxu0 0.0
    %676 = vmatpush1.xpose.msra.mxu0 0.0
    %677 = vmatprep.subr.mxu0 0.0
    %678 = vmatpush1.xpose.msra.mxu0 0.0
    %679 = vmatprep.subr.mxu0 0.0
    %680 = vmatpush1.xpose.msra.mxu0 0.0
    %681 = vmatprep.subr.mxu0 0.0
    %682 = vmatpush1.xpose.msra.mxu0 0.0
    %683 = vmatprep.subr.mxu0 0.0
    %684 = vmatpush1.xpose.msra.mxu0 0.0
    %685 = vmatprep.subr.mxu0 0.0
    %686 = vmatpush1.xpose.msra.mxu0 0.0
    %687 = vmatprep.subr.mxu0 0.0
    %688 = vmatpush1.xpose.msra.mxu0 0.0
    %689 = vmatprep.subr.mxu0 0.0
    %690 = vmatpush1.xpose.msra.mxu0 0.0
    %691 = vmatprep.subr.mxu0 0.0
    %692 = vmatpush1.xpose.msra.mxu0 0.0
    %693 = vmatprep.subr.mxu0 0.0
    %694 = vmatpush1.xpose.msra.mxu0 0.0
    %695 = vmatprep.mubr.f32.mxu0 %v617
    %696 = vmatmul.mubr.f32.gmra.mrb[0].mxu0 %v616
    %v697 = vpop.f32.mrb[0].mxu0
    %v698 = vadd.f32 0.0, %v697
    %v699 = vpop.f32.mrb[0].mxu0
    %700 = vdwg.mxu0
    %701 = vmatprep.subr.mxu0 %v626
    %702 = vmatpush1.xpose.msra.mxu0 %v610
    %703 = vmatprep.subr.mxu0 %v629
    %704 = vmatpush1.xpose.msra.mxu0 %v614
    %705 = vmatprep.subr.mxu0 0.0
    %706 = vmatpush1.xpose.msra.mxu0 0.0
    %707 = vmatprep.subr.mxu0 0.0
    %708 = vmatpush1.xpose.msra.mxu0 0.0
    %709 = vmatprep.subr.mxu0 0.0
    %710 = vmatpush1.xpose.msra.mxu0 0.0
    %711 = vmatprep.subr.mxu0 0.0
    %712 = vmatpush1.xpose.msra.mxu0 0.0
    %713 = vmatprep.subr.mxu0 0.0
    %714 = vmatpush1.xpose.msra.mxu0 0.0
    %715 = vmatprep.subr.mxu0 0.0
    %716 = vmatpush1.xpose.msra.mxu0 0.0
    %717 = vmatprep.subr.mxu0 0.0
    %718 = vmatpush1.xpose.msra.mxu0 0.0
    %719 = vmatprep.subr.mxu0 0.0
    %720 = vmatpush1.xpose.msra.mxu0 0.0
    %721 = vmatprep.subr.mxu0 0.0
    %722 = vmatpush1.xpose.msra.mxu0 0.0
    %723 = vmatprep.subr.mxu0 0.0
    %724 = vmatpush1.xpose.msra.mxu0 0.0
    %725 = vmatprep.subr.mxu0 0.0
    %726 = vmatpush1.xpose.msra.mxu0 0.0
    %727 = vmatprep.subr.mxu0 0.0
    %728 = vmatpush1.xpose.msra.mxu0 0.0
    %729 = vmatprep.subr.mxu0 0.0
    %730 = vmatpush1.xpose.msra.mxu0 0.0
    %731 = vmatprep.subr.mxu0 0.0
    %732 = vmatpush1.xpose.msra.mxu0 0.0
    %733 = vmatprep.subr.mxu0 0.0
    %734 = vmatpush1.xpose.msra.mxu0 0.0
    %735 = vmatprep.subr.mxu0 0.0
    %736 = vmatpush1.xpose.msra.mxu0 0.0
    %737 = vmatprep.subr.mxu0 0.0
    %738 = vmatpush1.xpose.msra.mxu0 0.0
    %739 = vmatprep.subr.mxu0 0.0
    %740 = vmatpush1.xpose.msra.mxu0 0.0
    %741 = vmatprep.subr.mxu0 0.0
    %742 = vmatpush1.xpose.msra.mxu0 0.0
    %743 = vmatprep.subr.mxu0 0.0
    %744 = vmatpush1.xpose.msra.mxu0 0.0
    %745 = vmatprep.subr.mxu0 0.0
    %746 = vmatpush1.xpose.msra.mxu0 0.0
    %747 = vmatprep.subr.mxu0 0.0
    %748 = vmatpush1.xpose.msra.mxu0 0.0
    %749 = vmatprep.subr.mxu0 0.0
    %750 = vmatpush1.xpose.msra.mxu0 0.0
    %751 = vmatprep.subr.mxu0 0.0
    %752 = vmatpush1.xpose.msra.mxu0 0.0
    %753 = vmatprep.subr.mxu0 0.0
    %754 = vmatpush1.xpose.msra.mxu0 0.0
    %755 = vmatprep.subr.mxu0 0.0
    %756 = vmatpush1.xpose.msra.mxu0 0.0
    %757 = vmatprep.subr.mxu0 0.0
    %758 = vmatpush1.xpose.msra.mxu0 0.0
    %759 = vmatprep.subr.mxu0 0.0
    %760 = vmatpush1.xpose.msra.mxu0 0.0
    %761 = vmatprep.subr.mxu0 0.0
    %762 = vmatpush1.xpose.msra.mxu0 0.0
    %763 = vmatprep.subr.mxu0 0.0
    %764 = vmatpush1.xpose.msra.mxu0 0.0
    %765 = vmatprep.mubr.f32.mxu0 %v623
    %766 = vmatmul.mubr.f32.gmra.mrb[0].mxu0 %v618
    %v767 = vpop.f32.mrb[0].mxu0
    %v768 = vadd.f32 %v698, %v767
    %v769 = vpop.f32.mrb[0].mxu0
    %770 = vdwg.mxu0
    %v771 = vadd.f32 %v604, %v768
    %s772 = scalar_lea.vmem [#allocation5], 192
    %v773 = vld [vmem:[%s772] sm:$0xff]
    %v774 = vld [vmem:[%s772 + $0x8] sm:$0xff]
    %v775 = vld [vmem:[%s772 + $0x10] sm:$0xff]
    %v776 = vld [vmem:[%s772 + $0x18] sm:$0xff]
    %v777 = vld [vmem:[%s772 + $0x20] sm:$0xff]
    %v778 = vld [vmem:[%s772 + $0x28] sm:$0xff]
    %v779 = vld [vmem:[%s772 + $0x30] sm:$0xff]
    %v780 = vld [vmem:[%s772 + $0x38] sm:$0xff]
    %v781 = vrot.slane %v274, 6
    %v782 = vrot.slane %v275, 6
    %v783 = vrot.slane %v276, 6
    %v784 = vrot.slane %v277, 6
    %v788 = vsel %vm310, %v784, 0
    %v791 = vsel %vm310, %v776, 0
    %v794 = vsel %vm310, %v780, 0
    %796 = vmatprep.subr.mxu0 %v774
    %797 = vmatpush1.xpose.msra.mxu0 %v773
    %798 = vmatprep.subr.mxu0 %v778
    %799 = vmatpush1.xpose.msra.mxu0 %v777
    %800 = vmatprep.subr.mxu0 0.0
    %801 = vmatpush1.xpose.msra.mxu0 0.0
    %802 = vmatprep.subr.mxu0 0.0
    %803 = vmatpush1.xpose.msra.mxu0 0.0
    %804 = vmatprep.subr.mxu0 0.0
    %805 = vmatpush1.xpose.msra.mxu0 0.0
    %806 = vmatprep.subr.mxu0 0.0
    %807 = vmatpush1.xpose.msra.mxu0 0.0
    %808 = vmatprep.subr.mxu0 0.0
    %809 = vmatpush1.xpose.msra.mxu0 0.0
    %810 = vmatprep.subr.mxu0 0.0
    %811 = vmatpush1.xpose.msra.mxu0 0.0
    %812 = vmatprep.subr.mxu0 0.0
    %813 = vmatpush1.xpose.msra.mxu0 0.0
    %814 = vmatprep.subr.mxu0 0.0
    %815 = vmatpush1.xpose.msra.mxu0 0.0
    %816 = vmatprep.subr.mxu0 0.0
    %817 = vmatpush1.xpose.msra.mxu0 0.0
    %818 = vmatprep.subr.mxu0 0.0
    %819 = vmatpush1.xpose.msra.mxu0 0.0
    %820 = vmatprep.subr.mxu0 0.0
    %821 = vmatpush1.xpose.msra.mxu0 0.0
    %822 = vmatprep.subr.mxu0 0.0
    %823 = vmatpush1.xpose.msra.mxu0 0.0
    %824 = vmatprep.subr.mxu0 0.0
    %825 = vmatpush1.xpose.msra.mxu0 0.0
    %826 = vmatprep.subr.mxu0 0.0
    %827 = vmatpush1.xpose.msra.mxu0 0.0
    %828 = vmatprep.subr.mxu0 0.0
    %829 = vmatpush1.xpose.msra.mxu0 0.0
    %830 = vmatprep.subr.mxu0 0.0
    %831 = vmatpush1.xpose.msra.mxu0 0.0
    %832 = vmatprep.subr.mxu0 0.0
    %833 = vmatpush1.xpose.msra.mxu0 0.0
    %834 = vmatprep.subr.mxu0 0.0
    %835 = vmatpush1.xpose.msra.mxu0 0.0
    %836 = vmatprep.subr.mxu0 0.0
    %837 = vmatpush1.xpose.msra.mxu0 0.0
    %838 = vmatprep.subr.mxu0 0.0
    %839 = vmatpush1.xpose.msra.mxu0 0.0
    %840 = vmatprep.subr.mxu0 0.0
    %841 = vmatpush1.xpose.msra.mxu0 0.0
    %842 = vmatprep.subr.mxu0 0.0
    %843 = vmatpush1.xpose.msra.mxu0 0.0
    %844 = vmatprep.subr.mxu0 0.0
    %845 = vmatpush1.xpose.msra.mxu0 0.0
    %846 = vmatprep.subr.mxu0 0.0
    %847 = vmatpush1.xpose.msra.mxu0 0.0
    %848 = vmatprep.subr.mxu0 0.0
    %849 = vmatpush1.xpose.msra.mxu0 0.0
    %850 = vmatprep.subr.mxu0 0.0
    %851 = vmatpush1.xpose.msra.mxu0 0.0
    %852 = vmatprep.subr.mxu0 0.0
    %853 = vmatpush1.xpose.msra.mxu0 0.0
    %854 = vmatprep.subr.mxu0 0.0
    %855 = vmatpush1.xpose.msra.mxu0 0.0
    %856 = vmatprep.subr.mxu0 0.0
    %857 = vmatpush1.xpose.msra.mxu0 0.0
    %858 = vmatprep.subr.mxu0 0.0
    %859 = vmatpush1.xpose.msra.mxu0 0.0
    %860 = vmatprep.mubr.f32.mxu0 %v782
    %861 = vmatmul.mubr.f32.gmra.mrb[0].mxu0 %v781
    %v862 = vpop.f32.mrb[0].mxu0
    %v863 = vadd.f32 0.0, %v862
    %v864 = vpop.f32.mrb[0].mxu0
    %865 = vdwg.mxu0
    %866 = vmatprep.subr.mxu0 %v791
    %867 = vmatpush1.xpose.msra.mxu0 %v775
    %868 = vmatprep.subr.mxu0 %v794
    %869 = vmatpush1.xpose.msra.mxu0 %v779
    %870 = vmatprep.subr.mxu0 0.0
    %871 = vmatpush1.xpose.msra.mxu0 0.0
    %872 = vmatprep.subr.mxu0 0.0
    %873 = vmatpush1.xpose.msra.mxu0 0.0
    %874 = vmatprep.subr.mxu0 0.0
    %875 = vmatpush1.xpose.msra.mxu0 0.0
    %876 = vmatprep.subr.mxu0 0.0
    %877 = vmatpush1.xpose.msra.mxu0 0.0
    %878 = vmatprep.subr.mxu0 0.0
    %879 = vmatpush1.xpose.msra.mxu0 0.0
    %880 = vmatprep.subr.mxu0 0.0
    %881 = vmatpush1.xpose.msra.mxu0 0.0
    %882 = vmatprep.subr.mxu0 0.0
    %883 = vmatpush1.xpose.msra.mxu0 0.0
    %884 = vmatprep.subr.mxu0 0.0
    %885 = vmatpush1.xpose.msra.mxu0 0.0
    %886 = vmatprep.subr.mxu0 0.0
    %887 = vmatpush1.xpose.msra.mxu0 0.0
    %888 = vmatprep.subr.mxu0 0.0
    %889 = vmatpush1.xpose.msra.mxu0 0.0
    %890 = vmatprep.subr.mxu0 0.0
    %891 = vmatpush1.xpose.msra.mxu0 0.0
    %892 = vmatprep.subr.mxu0 0.0
    %893 = vmatpush1.xpose.msra.mxu0 0.0
    %894 = vmatprep.subr.mxu0 0.0
    %895 = vmatpush1.xpose.msra.mxu0 0.0
    %896 = vmatprep.subr.mxu0 0.0
    %897 = vmatpush1.xpose.msra.mxu0 0.0
    %898 = vmatprep.subr.mxu0 0.0
    %899 = vmatpush1.xpose.msra.mxu0 0.0
    %900 = vmatprep.subr.mxu0 0.0
    %901 = vmatpush1.xpose.msra.mxu0 0.0
    %902 = vmatprep.subr.mxu0 0.0
    %903 = vmatpush1.xpose.msra.mxu0 0.0
    %904 = vmatprep.subr.mxu0 0.0
    %905 = vmatpush1.xpose.msra.mxu0 0.0
    %906 = vmatprep.subr.mxu0 0.0
    %907 = vmatpush1.xpose.msra.mxu0 0.0
    %908 = vmatprep.subr.mxu0 0.0
    %909 = vmatpush1.xpose.msra.mxu0 0.0
    %910 = vmatprep.subr.mxu0 0.0
    %911 = vmatpush1.xpose.msra.mxu0 0.0
    %912 = vmatprep.subr.mxu0 0.0
    %913 = vmatpush1.xpose.msra.mxu0 0.0
    %914 = vmatprep.subr.mxu0 0.0
    %915 = vmatpush1.xpose.msra.mxu0 0.0
    %916 = vmatprep.subr.mxu0 0.0
    %917 = vmatpush1.xpose.msra.mxu0 0.0
    %918 = vmatprep.subr.mxu0 0.0
    %919 = vmatpush1.xpose.msra.mxu0 0.0
    %920 = vmatprep.subr.mxu0 0.0
    %921 = vmatpush1.xpose.msra.mxu0 0.0
    %922 = vmatprep.subr.mxu0 0.0
    %923 = vmatpush1.xpose.msra.mxu0 0.0
    %924 = vmatprep.subr.mxu0 0.0
    %925 = vmatpush1.xpose.msra.mxu0 0.0
    %926 = vmatprep.subr.mxu0 0.0
    %927 = vmatpush1.xpose.msra.mxu0 0.0
    %928 = vmatprep.subr.mxu0 0.0
    %929 = vmatpush1.xpose.msra.mxu0 0.0
    %930 = vmatprep.mubr.f32.mxu0 %v788
    %931 = vmatmul.mubr.f32.gmra.mrb[0].mxu0 %v783
    %v932 = vpop.f32.mrb[0].mxu0
    %v933 = vadd.f32 %v863, %v932
    %v934 = vpop.f32.mrb[0].mxu0
    %935 = vdwg.mxu0
    %v936 = vadd.f32 %v771, %v933
    %s937 = scalar_lea.vmem [#allocation5], 256
    %v938 = vld [vmem:[%s937] sm:$0xff]
    %v939 = vld [vmem:[%s937 + $0x8] sm:$0xff]
    %v940 = vld [vmem:[%s937 + $0x10] sm:$0xff]
    %v941 = vld [vmem:[%s937 + $0x18] sm:$0xff]
    %v942 = vld [vmem:[%s937 + $0x20] sm:$0xff]
    %v943 = vld [vmem:[%s937 + $0x28] sm:$0xff]
    %v944 = vld [vmem:[%s937 + $0x30] sm:$0xff]
    %v945 = vld [vmem:[%s937 + $0x38] sm:$0xff]
    %v947 = vsel %vm310, %v281, 0
    %v950 = vsel %vm310, %v941, 0
    %v953 = vsel %vm310, %v945, 0
    %955 = vmatprep.subr.mxu0 %v939
    %956 = vmatpush1.xpose.msra.mxu0 %v938
    %957 = vmatprep.subr.mxu0 %v943
    %958 = vmatpush1.xpose.msra.mxu0 %v942
    %959 = vmatprep.subr.mxu0 0.0
    %960 = vmatpush1.xpose.msra.mxu0 0.0
    %961 = vmatprep.subr.mxu0 0.0
    %962 = vmatpush1.xpose.msra.mxu0 0.0
    %963 = vmatprep.subr.mxu0 0.0
    %964 = vmatpush1.xpose.msra.mxu0 0.0
    %965 = vmatprep.subr.mxu0 0.0
    %966 = vmatpush1.xpose.msra.mxu0 0.0
    %967 = vmatprep.subr.mxu0 0.0
    %968 = vmatpush1.xpose.msra.mxu0 0.0
    %969 = vmatprep.subr.mxu0 0.0
    %970 = vmatpush1.xpose.msra.mxu0 0.0
    %971 = vmatprep.subr.mxu0 0.0
    %972 = vmatpush1.xpose.msra.mxu0 0.0
    %973 = vmatprep.subr.mxu0 0.0
    %974 = vmatpush1.xpose.msra.mxu0 0.0
    %975 = vmatprep.subr.mxu0 0.0
    %976 = vmatpush1.xpose.msra.mxu0 0.0
    %977 = vmatprep.subr.mxu0 0.0
    %978 = vmatpush1.xpose.msra.mxu0 0.0
    %979 = vmatprep.subr.mxu0 0.0
    %980 = vmatpush1.xpose.msra.mxu0 0.0
    %981 = vmatprep.subr.mxu0 0.0
    %982 = vmatpush1.xpose.msra.mxu0 0.0
    %983 = vmatprep.subr.mxu0 0.0
    %984 = vmatpush1.xpose.msra.mxu0 0.0
    %985 = vmatprep.subr.mxu0 0.0
    %986 = vmatpush1.xpose.msra.mxu0 0.0
    %987 = vmatprep.subr.mxu0 0.0
    %988 = vmatpush1.xpose.msra.mxu0 0.0
    %989 = vmatprep.subr.mxu0 0.0
    %990 = vmatpush1.xpose.msra.mxu0 0.0
    %991 = vmatprep.subr.mxu0 0.0
    %992 = vmatpush1.xpose.msra.mxu0 0.0
    %993 = vmatprep.subr.mxu0 0.0
    %994 = vmatpush1.xpose.msra.mxu0 0.0
    %995 = vmatprep.subr.mxu0 0.0
    %996 = vmatpush1.xpose.msra.mxu0 0.0
    %997 = vmatprep.subr.mxu0 0.0
    %998 = vmatpush1.xpose.msra.mxu0 0.0
    %999 = vmatprep.subr.mxu0 0.0
    %1000 = vmatpush1.xpose.msra.mxu0 0.0
    %1001 = vmatprep.subr.mxu0 0.0
    %1002 = vmatpush1.xpose.msra.mxu0 0.0
    %1003 = vmatprep.subr.mxu0 0.0
    %1004 = vmatpush1.xpose.msra.mxu0 0.0
    %1005 = vmatprep.subr.mxu0 0.0
    %1006 = vmatpush1.xpose.msra.mxu0 0.0
    %1007 = vmatprep.subr.mxu0 0.0
    %1008 = vmatpush1.xpose.msra.mxu0 0.0
    %1009 = vmatprep.subr.mxu0 0.0
    %1010 = vmatpush1.xpose.msra.mxu0 0.0
    %1011 = vmatprep.subr.mxu0 0.0
    %1012 = vmatpush1.xpose.msra.mxu0 0.0
    %1013 = vmatprep.subr.mxu0 0.0
    %1014 = vmatpush1.xpose.msra.mxu0 0.0
    %1015 = vmatprep.subr.mxu0 0.0
    %1016 = vmatpush1.xpose.msra.mxu0 0.0
    %1017 = vmatprep.subr.mxu0 0.0
    %1018 = vmatpush1.xpose.msra.mxu0 0.0
    %1019 = vmatprep.mubr.f32.mxu0 %v279
    %1020 = vmatmul.mubr.f32.gmra.mrb[0].mxu0 %v278
    %v1021 = vpop.f32.mrb[0].mxu0
    %v1022 = vadd.f32 0.0, %v1021
    %v1023 = vpop.f32.mrb[0].mxu0
    %1024 = vdwg.mxu0
    %1025 = vmatprep.subr.mxu0 %v950
    %1026 = vmatpush1.xpose.msra.mxu0 %v940
    %1027 = vmatprep.subr.mxu0 %v953
    %1028 = vmatpush1.xpose.msra.mxu0 %v944
    %1029 = vmatprep.subr.mxu0 0.0
    %1030 = vmatpush1.xpose.msra.mxu0 0.0
    %1031 = vmatprep.subr.mxu0 0.0
    %1032 = vmatpush1.xpose.msra.mxu0 0.0
    %1033 = vmatprep.subr.mxu0 0.0
    %1034 = vmatpush1.xpose.msra.mxu0 0.0
    %1035 = vmatprep.subr.mxu0 0.0
    %1036 = vmatpush1.xpose.msra.mxu0 0.0
    %1037 = vmatprep.subr.mxu0 0.0
    %1038 = vmatpush1.xpose.msra.mxu0 0.0
    %1039 = vmatprep.subr.mxu0 0.0
    %1040 = vmatpush1.xpose.msra.mxu0 0.0
    %1041 = vmatprep.subr.mxu0 0.0
    %1042 = vmatpush1.xpose.msra.mxu0 0.0
    %1043 = vmatprep.subr.mxu0 0.0
    %1044 = vmatpush1.xpose.msra.mxu0 0.0
    %1045 = vmatprep.subr.mxu0 0.0
    %1046 = vmatpush1.xpose.msra.mxu0 0.0
    %1047 = vmatprep.subr.mxu0 0.0
    %1048 = vmatpush1.xpose.msra.mxu0 0.0
    %1049 = vmatprep.subr.mxu0 0.0
    %1050 = vmatpush1.xpose.msra.mxu0 0.0
    %1051 = vmatprep.subr.mxu0 0.0
    %1052 = vmatpush1.xpose.msra.mxu0 0.0
    %1053 = vmatprep.subr.mxu0 0.0
    %1054 = vmatpush1.xpose.msra.mxu0 0.0
    %1055 = vmatprep.subr.mxu0 0.0
    %1056 = vmatpush1.xpose.msra.mxu0 0.0
    %1057 = vmatprep.subr.mxu0 0.0
    %1058 = vmatpush1.xpose.msra.mxu0 0.0
    %1059 = vmatprep.subr.mxu0 0.0
    %1060 = vmatpush1.xpose.msra.mxu0 0.0
    %1061 = vmatprep.subr.mxu0 0.0
    %1062 = vmatpush1.xpose.msra.mxu0 0.0
    %1063 = vmatprep.subr.mxu0 0.0
    %1064 = vmatpush1.xpose.msra.mxu0 0.0
    %1065 = vmatprep.subr.mxu0 0.0
    %1066 = vmatpush1.xpose.msra.mxu0 0.0
    %1067 = vmatprep.subr.mxu0 0.0
    %1068 = vmatpush1.xpose.msra.mxu0 0.0
    %1069 = vmatprep.subr.mxu0 0.0
    %1070 = vmatpush1.xpose.msra.mxu0 0.0
    %1071 = vmatprep.subr.mxu0 0.0
    %1072 = vmatpush1.xpose.msra.mxu0 0.0
    %1073 = vmatprep.subr.mxu0 0.0
    %1074 = vmatpush1.xpose.msra.mxu0 0.0
    %1075 = vmatprep.subr.mxu0 0.0
    %1076 = vmatpush1.xpose.msra.mxu0 0.0
    %1077 = vmatprep.subr.mxu0 0.0
    %1078 = vmatpush1.xpose.msra.mxu0 0.0
    %1079 = vmatprep.subr.mxu0 0.0
    %1080 = vmatpush1.xpose.msra.mxu0 0.0
    %1081 = vmatprep.subr.mxu0 0.0
    %1082 = vmatpush1.xpose.msra.mxu0 0.0
    %1083 = vmatprep.subr.mxu0 0.0
    %1084 = vmatpush1.xpose.msra.mxu0 0.0
    %1085 = vmatprep.subr.mxu0 0.0
    %1086 = vmatpush1.xpose.msra.mxu0 0.0
    %1087 = vmatprep.subr.mxu0 0.0
    %1088 = vmatpush1.xpose.msra.mxu0 0.0
    %1089 = vmatprep.mubr.f32.mxu0 %v947
    %1090 = vmatmul.mubr.f32.gmra.mrb[0].mxu0 %v280
    %v1091 = vpop.f32.mrb[0].mxu0
    %v1092 = vadd.f32 %v1022, %v1091
    %v1093 = vpop.f32.mrb[0].mxu0
    %1094 = vdwg.mxu0
    %v1095 = vadd.f32 %v936, %v1092
    %s1096 = scalar_lea.vmem [#allocation5], 320
    %v1097 = vld [vmem:[%s1096] sm:$0xff]
    %v1098 = vld [vmem:[%s1096 + $0x8] sm:$0xff]
    %v1099 = vld [vmem:[%s1096 + $0x10] sm:$0xff]
    %v1100 = vld [vmem:[%s1096 + $0x18] sm:$0xff]
    %v1101 = vld [vmem:[%s1096 + $0x20] sm:$0xff]
    %v1102 = vld [vmem:[%s1096 + $0x28] sm:$0xff]
    %v1103 = vld [vmem:[%s1096 + $0x30] sm:$0xff]
    %v1104 = vld [vmem:[%s1096 + $0x38] sm:$0xff]
    %v1108 = vrot.slane %v278, 2
    %v1109 = vrot.slane %v279, 2
    %v1110 = vrot.slane %v280, 2
    %v1111 = vrot.slane %v281, 2
    %v1115 = vsel %vm310, %v1111, 0
    %v1118 = vsel %vm310, %v1100, 0
    %v1121 = vsel %vm310, %v1104, 0
    %1123 = vmatprep.subr.mxu0 %v1098
    %1124 = vmatpush1.xpose.msra.mxu0 %v1097
    %1125 = vmatprep.subr.mxu0 %v1102
    %1126 = vmatpush1.xpose.msra.mxu0 %v1101
    %1127 = vmatprep.subr.mxu0 0.0
    %1128 = vmatpush1.xpose.msra.mxu0 0.0
    %1129 = vmatprep.subr.mxu0 0.0
    %1130 = vmatpush1.xpose.msra.mxu0 0.0
    %1131 = vmatprep.subr.mxu0 0.0
    %1132 = vmatpush1.xpose.msra.mxu0 0.0
    %1133 = vmatprep.subr.mxu0 0.0
    %1134 = vmatpush1.xpose.msra.mxu0 0.0
    %1135 = vmatprep.subr.mxu0 0.0
    %1136 = vmatpush1.xpose.msra.mxu0 0.0
    %1137 = vmatprep.subr.mxu0 0.0
    %1138 = vmatpush1.xpose.msra.mxu0 0.0
    %1139 = vmatprep.subr.mxu0 0.0
    %1140 = vmatpush1.xpose.msra.mxu0 0.0
    %1141 = vmatprep.subr.mxu0 0.0
    %1142 = vmatpush1.xpose.msra.mxu0 0.0
    %1143 = vmatprep.subr.mxu0 0.0
    %1144 = vmatpush1.xpose.msra.mxu0 0.0
    %1145 = vmatprep.subr.mxu0 0.0
    %1146 = vmatpush1.xpose.msra.mxu0 0.0
    %1147 = vmatprep.subr.mxu0 0.0
    %1148 = vmatpush1.xpose.msra.mxu0 0.0
    %1149 = vmatprep.subr.mxu0 0.0
    %1150 = vmatpush1.xpose.msra.mxu0 0.0
    %1151 = vmatprep.subr.mxu0 0.0
    %1152 = vmatpush1.xpose.msra.mxu0 0.0
    %1153 = vmatprep.subr.mxu0 0.0
    %1154 = vmatpush1.xpose.msra.mxu0 0.0
    %1155 = vmatprep.subr.mxu0 0.0
    %1156 = vmatpush1.xpose.msra.mxu0 0.0
    %1157 = vmatprep.subr.mxu0 0.0
    %1158 = vmatpush1.xpose.msra.mxu0 0.0
    %1159 = vmatprep.subr.mxu0 0.0
    %1160 = vmatpush1.xpose.msra.mxu0 0.0
    %1161 = vmatprep.subr.mxu0 0.0
    %1162 = vmatpush1.xpose.msra.mxu0 0.0
    %1163 = vmatprep.subr.mxu0 0.0
    %1164 = vmatpush1.xpose.msra.mxu0 0.0
    %1165 = vmatprep.subr.mxu0 0.0
    %1166 = vmatpush1.xpose.msra.mxu0 0.0
    %1167 = vmatprep.subr.mxu0 0.0
    %1168 = vmatpush1.xpose.msra.mxu0 0.0
    %1169 = vmatprep.subr.mxu0 0.0
    %1170 = vmatpush1.xpose.msra.mxu0 0.0
    %1171 = vmatprep.subr.mxu0 0.0
    %1172 = vmatpush1.xpose.msra.mxu0 0.0
    %1173 = vmatprep.subr.mxu0 0.0
    %1174 = vmatpush1.xpose.msra.mxu0 0.0
    %1175 = vmatprep.subr.mxu0 0.0
    %1176 = vmatpush1.xpose.msra.mxu0 0.0
    %1177 = vmatprep.subr.mxu0 0.0
    %1178 = vmatpush1.xpose.msra.mxu0 0.0
    %1179 = vmatprep.subr.mxu0 0.0
    %1180 = vmatpush1.xpose.msra.mxu0 0.0
    %1181 = vmatprep.subr.mxu0 0.0
    %1182 = vmatpush1.xpose.msra.mxu0 0.0
    %1183 = vmatprep.subr.mxu0 0.0
    %1184 = vmatpush1.xpose.msra.mxu0 0.0
    %1185 = vmatprep.subr.mxu0 0.0
    %1186 = vmatpush1.xpose.msra.mxu0 0.0
    %1187 = vmatprep.mubr.f32.mxu0 %v1109
    %1188 = vmatmul.mubr.f32.gmra.mrb[0].mxu0 %v1108
    %v1189 = vpop.f32.mrb[0].mxu0
    %v1190 = vadd.f32 0.0, %v1189
    %v1191 = vpop.f32.mrb[0].mxu0
    %1192 = vdwg.mxu0
    %1193 = vmatprep.subr.mxu0 %v1118
    %1194 = vmatpush1.xpose.msra.mxu0 %v1099
    %1195 = vmatprep.subr.mxu0 %v1121
    %1196 = vmatpush1.xpose.msra.mxu0 %v1103
    %1197 = vmatprep.subr.mxu0 0.0
    %1198 = vmatpush1.xpose.msra.mxu0 0.0
    %1199 = vmatprep.subr.mxu0 0.0
    %1200 = vmatpush1.xpose.msra.mxu0 0.0
    %1201 = vmatprep.subr.mxu0 0.0
    %1202 = vmatpush1.xpose.msra.mxu0 0.0
    %1203 = vmatprep.subr.mxu0 0.0
    %1204 = vmatpush1.xpose.msra.mxu0 0.0
    %1205 = vmatprep.subr.mxu0 0.0
    %1206 = vmatpush1.xpose.msra.mxu0 0.0
    %1207 = vmatprep.subr.mxu0 0.0
    %1208 = vmatpush1.xpose.msra.mxu0 0.0
    %1209 = vmatprep.subr.mxu0 0.0
    %1210 = vmatpush1.xpose.msra.mxu0 0.0
    %1211 = vmatprep.subr.mxu0 0.0
    %1212 = vmatpush1.xpose.msra.mxu0 0.0
    %1213 = vmatprep.subr.mxu0 0.0
    %1214 = vmatpush1.xpose.msra.mxu0 0.0
    %1215 = vmatprep.subr.mxu0 0.0
    %1216 = vmatpush1.xpose.msra.mxu0 0.0
    %1217 = vmatprep.subr.mxu0 0.0
    %1218 = vmatpush1.xpose.msra.mxu0 0.0
    %1219 = vmatprep.subr.mxu0 0.0
    %1220 = vmatpush1.xpose.msra.mxu0 0.0
    %1221 = vmatprep.subr.mxu0 0.0
    %1222 = vmatpush1.xpose.msra.mxu0 0.0
    %1223 = vmatprep.subr.mxu0 0.0
    %1224 = vmatpush1.xpose.msra.mxu0 0.0
    %1225 = vmatprep.subr.mxu0 0.0
    %1226 = vmatpush1.xpose.msra.mxu0 0.0
    %1227 = vmatprep.subr.mxu0 0.0
    %1228 = vmatpush1.xpose.msra.mxu0 0.0
    %1229 = vmatprep.subr.mxu0 0.0
    %1230 = vmatpush1.xpose.msra.mxu0 0.0
    %1231 = vmatprep.subr.mxu0 0.0
    %1232 = vmatpush1.xpose.msra.mxu0 0.0
    %1233 = vmatprep.subr.mxu0 0.0
    %1234 = vmatpush1.xpose.msra.mxu0 0.0
    %1235 = vmatprep.subr.mxu0 0.0
    %1236 = vmatpush1.xpose.msra.mxu0 0.0
    %1237 = vmatprep.subr.mxu0 0.0
    %1238 = vmatpush1.xpose.msra.mxu0 0.0
    %1239 = vmatprep.subr.mxu0 0.0
    %1240 = vmatpush1.xpose.msra.mxu0 0.0
    %1241 = vmatprep.subr.mxu0 0.0
    %1242 = vmatpush1.xpose.msra.mxu0 0.0
    %1243 = vmatprep.subr.mxu0 0.0
    %1244 = vmatpush1.xpose.msra.mxu0 0.0
    %1245 = vmatprep.subr.mxu0 0.0
    %1246 = vmatpush1.xpose.msra.mxu0 0.0
    %1247 = vmatprep.subr.mxu0 0.0
    %1248 = vmatpush1.xpose.msra.mxu0 0.0
    %1249 = vmatprep.subr.mxu0 0.0
    %1250 = vmatpush1.xpose.msra.mxu0 0.0
    %1251 = vmatprep.subr.mxu0 0.0
    %1252 = vmatpush1.xpose.msra.mxu0 0.0
    %1253 = vmatprep.subr.mxu0 0.0
    %1254 = vmatpush1.xpose.msra.mxu0 0.0
    %1255 = vmatprep.subr.mxu0 0.0
    %1256 = vmatpush1.xpose.msra.mxu0 0.0
    %1257 = vmatprep.mubr.f32.mxu0 %v1115
    %1258 = vmatmul.mubr.f32.gmra.mrb[0].mxu0 %v1110
    %v1259 = vpop.f32.mrb[0].mxu0
    %v1260 = vadd.f32 %v1190, %v1259
    %v1261 = vpop.f32.mrb[0].mxu0
    %1262 = vdwg.mxu0
    %v1263 = vadd.f32 %v1095, %v1260
    %v1264 = vld [vmem:[%s4] sm:$0x1]
    %v1266 = vlaneseq
    %v1267 = vshrl.u32 %v1266, 7
    %v1268 = vsub.s32 0, %v1267
    %v1269 = vrot.slane %v1264, %v1268
    %v1271 = vadd.f32 %v1263, %v1269
    %v1272 = vmax.f32 %v1271, 0.0
    %v1273 = vld [vmem:[%s5] sm:$0xff]
    %v1274 = vld [vmem:[%s5 + $0x8] sm:$0xff]
    %v1275 = vld [vmem:[%s6] sm:$0x1]
    %v1277 = vlaneseq
    %v1278 = vshrl.u32 %v1277, 7
    %v1279 = vsub.s32 0, %v1278
    %v1280 = vrot.slane %v1275, %v1279
    %vm1282 = vcmask 130048
    %v1284 = vsel %vm1282, %v1272, 0
    %1286 = vmatprep.subr.mxu0 0.0
    %1287 = vmatpush1.msra.mxu0 %v1273
    %1288 = vmatprep.subr.mxu0 0.0
    %1289 = vmatpush1.msra.mxu0 %v1274
    %1290 = vmatprep.subr.mxu0 0.0
    %1291 = vmatpush1.msra.mxu0 0.0
    %1292 = vmatprep.subr.mxu0 0.0
    %1293 = vmatpush1.msra.mxu0 0.0
    %1294 = vmatprep.subr.mxu0 0.0
    %1295 = vmatpush1.msra.mxu0 0.0
    %1296 = vmatprep.subr.mxu0 0.0
    %1297 = vmatpush1.msra.mxu0 0.0
    %1298 = vmatprep.subr.mxu0 0.0
    %1299 = vmatpush1.msra.mxu0 0.0
    %1300 = vmatprep.subr.mxu0 0.0
    %1301 = vmatpush1.msra.mxu0 0.0
    %1302 = vmatprep.subr.mxu0 0.0
    %1303 = vmatpush1.msra.mxu0 0.0
    %1304 = vmatprep.subr.mxu0 0.0
    %1305 = vmatpush1.msra.mxu0 0.0
    %1306 = vmatprep.subr.mxu0 0.0
    %1307 = vmatpush1.msra.mxu0 0.0
    %1308 = vmatprep.subr.mxu0 0.0
    %1309 = vmatpush1.msra.mxu0 0.0
    %1310 = vmatprep.subr.mxu0 0.0
    %1311 = vmatpush1.msra.mxu0 0.0
    %1312 = vmatprep.subr.mxu0 0.0
    %1313 = vmatpush1.msra.mxu0 0.0
    %1314 = vmatprep.subr.mxu0 0.0
    %1315 = vmatpush1.msra.mxu0 0.0
    %1316 = vmatprep.subr.mxu0 0.0
    %1317 = vmatpush1.msra.mxu0 0.0
    %1318 = vmatprep.subr.mxu0 0.0
    %1319 = vmatpush1.msra.mxu0 0.0
    %1320 = vmatprep.subr.mxu0 0.0
    %1321 = vmatpush1.msra.mxu0 0.0
    %1322 = vmatprep.subr.mxu0 0.0
    %1323 = vmatpush1.msra.mxu0 0.0
    %1324 = vmatprep.subr.mxu0 0.0
    %1325 = vmatpush1.msra.mxu0 0.0
    %1326 = vmatprep.subr.mxu0 0.0
    %1327 = vmatpush1.msra.mxu0 0.0
    %1328 = vmatprep.subr.mxu0 0.0
    %1329 = vmatpush1.msra.mxu0 0.0
    %1330 = vmatprep.subr.mxu0 0.0
    %1331 = vmatpush1.msra.mxu0 0.0
    %1332 = vmatprep.subr.mxu0 0.0
    %1333 = vmatpush1.msra.mxu0 0.0
    %1334 = vmatprep.subr.mxu0 0.0
    %1335 = vmatpush1.msra.mxu0 0.0
    %1336 = vmatprep.subr.mxu0 0.0
    %1337 = vmatpush1.msra.mxu0 0.0
    %1338 = vmatprep.subr.mxu0 0.0
    %1339 = vmatpush1.msra.mxu0 0.0
    %1340 = vmatprep.subr.mxu0 0.0
    %1341 = vmatpush1.msra.mxu0 0.0
    %1342 = vmatprep.subr.mxu0 0.0
    %1343 = vmatpush1.msra.mxu0 0.0
    %1344 = vmatprep.subr.mxu0 0.0
    %1345 = vmatpush1.msra.mxu0 0.0
    %1346 = vmatprep.subr.mxu0 0.0
    %1347 = vmatpush1.msra.mxu0 0.0
    %1348 = vmatprep.subr.mxu0 0.0
    %1349 = vmatpush1.msra.mxu0 0.0
    %1350 = vmatprep.mubr.f32.mxu0 0.0
    %1351 = vmatmul.mubr.f32.gmra.mrb[0].mxu0 %v1284
    %v1352 = vpop.f32.mrb[0].mxu0
    %v1353 = vadd.f32 %v1280, %v1352
    %v1354 = vpop.f32.mrb[0].mxu0
    %1355 = vdwg.mxu0
    %v1356 = vmax.f32 %v1353, 0.0
    %v1357 = vld [vmem:[%s7] sm:$0xff]
    %v1358 = vld [vmem:[%s7 + $0x8] sm:$0xff]
    %v1359 = vld [vmem:[%s7 + $0x10] sm:$0xff]
    %v1360 = vld [vmem:[%s7 + $0x18] sm:$0xff]
    %v1361 = vld [vmem:[%s7 + $0x20] sm:$0xff]
    %v1362 = vld [vmem:[%s7 + $0x28] sm:$0xff]
    %v1363 = vld [vmem:[%s7 + $0x30] sm:$0xff]
    %v1364 = vld [vmem:[%s7 + $0x38] sm:$0xff]
    %v1365 = vld [vmem:[#allocation2] sm:$0x1]
    %v1367 = vlaneseq
    %v1368 = vshrl.u32 %v1367, 7
    %v1369 = vsub.s32 0, %v1368
    %v1370 = vrot.slane %v1365, %v1369
    %vm1372 = vcmask 523264
    %v1374 = vsel %vm1372, %v1356, 0
    %1376 = vmatprep.subr.mxu0 0.0
    %1377 = vmatpush1.msra.mxu0 %v1357
    %1378 = vmatprep.subr.mxu0 0.0
    %1379 = vmatpush1.msra.mxu0 %v1358
    %1380 = vmatprep.subr.mxu0 0.0
    %1381 = vmatpush1.msra.mxu0 %v1359
    %1382 = vmatprep.subr.mxu0 0.0
    %1383 = vmatpush1.msra.mxu0 %v1360
    %1384 = vmatprep.subr.mxu0 0.0
    %1385 = vmatpush1.msra.mxu0 %v1361
    %1386 = vmatprep.subr.mxu0 0.0
    %1387 = vmatpush1.msra.mxu0 %v1362
    %1388 = vmatprep.subr.mxu0 0.0
    %1389 = vmatpush1.msra.mxu0 %v1363
    %1390 = vmatprep.subr.mxu0 0.0
    %1391 = vmatpush1.msra.mxu0 %v1364
    %1392 = vmatprep.subr.mxu0 0.0
    %1393 = vmatpush1.msra.mxu0 0.0
    %1394 = vmatprep.subr.mxu0 0.0
    %1395 = vmatpush1.msra.mxu0 0.0
    %1396 = vmatprep.subr.mxu0 0.0
    %1397 = vmatpush1.msra.mxu0 0.0
    %1398 = vmatprep.subr.mxu0 0.0
    %1399 = vmatpush1.msra.mxu0 0.0
    %1400 = vmatprep.subr.mxu0 0.0
    %1401 = vmatpush1.msra.mxu0 0.0
    %1402 = vmatprep.subr.mxu0 0.0
    %1403 = vmatpush1.msra.mxu0 0.0
    %1404 = vmatprep.subr.mxu0 0.0
    %1405 = vmatpush1.msra.mxu0 0.0
    %1406 = vmatprep.subr.mxu0 0.0
    %1407 = vmatpush1.msra.mxu0 0.0
    %1408 = vmatprep.subr.mxu0 0.0
    %1409 = vmatpush1.msra.mxu0 0.0
    %1410 = vmatprep.subr.mxu0 0.0
    %1411 = vmatpush1.msra.mxu0 0.0
    %1412 = vmatprep.subr.mxu0 0.0
    %1413 = vmatpush1.msra.mxu0 0.0
    %1414 = vmatprep.subr.mxu0 0.0
    %1415 = vmatpush1.msra.mxu0 0.0
    %1416 = vmatprep.subr.mxu0 0.0
    %1417 = vmatpush1.msra.mxu0 0.0
    %1418 = vmatprep.subr.mxu0 0.0
    %1419 = vmatpush1.msra.mxu0 0.0
    %1420 = vmatprep.subr.mxu0 0.0
    %1421 = vmatpush1.msra.mxu0 0.0
    %1422 = vmatprep.subr.mxu0 0.0
    %1423 = vmatpush1.msra.mxu0 0.0
    %1424 = vmatprep.subr.mxu0 0.0
    %1425 = vmatpush1.msra.mxu0 0.0
    %1426 = vmatprep.subr.mxu0 0.0
    %1427 = vmatpush1.msra.mxu0 0.0
    %1428 = vmatprep.subr.mxu0 0.0
    %1429 = vmatpush1.msra.mxu0 0.0
    %1430 = vmatprep.subr.mxu0 0.0
    %1431 = vmatpush1.msra.mxu0 0.0
    %1432 = vmatprep.subr.mxu0 0.0
    %1433 = vmatpush1.msra.mxu0 0.0
    %1434 = vmatprep.subr.mxu0 0.0
    %1435 = vmatpush1.msra.mxu0 0.0
    %1436 = vmatprep.subr.mxu0 0.0
    %1437 = vmatpush1.msra.mxu0 0.0
    %1438 = vmatprep.subr.mxu0 0.0
    %1439 = vmatpush1.msra.mxu0 0.0
    %1440 = vmatprep.mubr.f32.mxu0 0.0
    %1441 = vmatmul.mubr.f32.gmra.mrb[0].mxu0 %v1374
    %v1442 = vpop.f32.mrb[0].mxu0
    %v1443 = vadd.f32 %v1370, %v1442
    %v1444 = vpop.f32.mrb[0].mxu0
    %1445 = vdwg.mxu0
    %vm1446 = vcmask 1024
    %1447 = vst.msk [vmem:[%s9] sm:$0x3] %vm1446, %v1443
    // Predicated region
    $region46: #{tpu_custom_call.1} parent=1 // pred_check
      _
    $region47: #{tpu_custom_call.1} parent=1 // pred_check_branch
      %1449 = sbr.rel (0) target = $region49
    $region48: #{tpu_custom_call.1} parent=1 // pred_region
      _
    $region49: #{tpu_custom_call.1} parent=1 // pred_fallthru
      _
    // Predicated region
    $region50: #{tpu_custom_call.1} parent=1 // pred_check
      _
    $region51: #{tpu_custom_call.1} parent=1 // pred_check_branch
      %1451 = sbr.rel (0) target = $region53
    $region52: #{tpu_custom_call.1} parent=1 // pred_region
      _
    $region53: #{tpu_custom_call.1} parent=1 // pred_fallthru
      _
    %1452 = vsyncpa [#allocation4], 1
    %1453 = vsyncpa [#allocation6], 1

</llo_original>
